<compile_context>
chip_gen: v7x
topology: tpu7x:2x2x1
jax: 0.10.0
libtpu: 0.0.40
codegen_flags: <defaults>
</compile_context>

<pallas_src>
import functools
import math

import jax
import jax.numpy as jnp
from jax.experimental import pallas as pl
from jax.experimental.pallas import tpu as pltpu


VMEM_BUDGET_BYTES = 24 * 1024 * 1024   # conservative across v5e / v6e / v7x


# ------------------------------ helpers --------------------------------------
def _round_up(n, m):
    return ((n + m - 1) // m) * m


def _pad2(a, rows, cols):
    pr, pc = rows - a.shape[0], cols - a.shape[1]
    if pr == 0 and pc == 0:
        return a
    return jnp.pad(a, ((0, pr), (0, pc)))


def _choose_block(B, T_pad, per_row_bytes, resident_bytes):
    """Pick (block_b, B_pad).

    block_b is a multiple of 8 (or the whole small batch), sized from the VMEM
    budget, capped so the grid has >=2 steps when B allows it (v7x megacore),
    and chosen to minimize batch padding.
    """
    if B <= 8:
        return B, B                       # single full-batch block == array dims
    avail = max(VMEM_BUDGET_BYTES - 2 * resident_bytes, 8 * T_pad * per_row_bytes)
    max_bb = max(8, (avail // (T_pad * per_row_bytes)) // 8 * 8)
    cap = min(max_bb, max(8, (B // 2) // 8 * 8))      # keep >=2 grid steps
    candidates = range(8, cap + 1, 8)
    best_bb = min(candidates, key=lambda c: (_round_up(B, c) - B, -c))
    return best_bb, _round_up(B, best_bb)


# ----------------------------- Pallas kernel ---------------------------------
def iqn_kernel(
    x_ref,       # (block_b, S)          f32 state rows for this block
    taus_ref,    # (block_b*T_pad, 1)    f32 quantile fractions
    pis_ref,     # (1, Cp)               f32 pi * [1..n_cos], zero padded
    w_head_ref,  # (S,  Lp)  bf16
    b_head_ref,  # (1,  Lp)  f32
    w_cos_ref,   # (Cp, Lp)  bf16
    b_cos_ref,   # (1,  Lp)  f32
    w_ff1_ref,   # (Lp, Lp)  bf16
    b_ff1_ref,   # (1,  Lp)  f32
    w_ff2_ref,   # (Lp, Ap)  bf16
    b_ff2_ref,   # (1,  Ap)  f32
    out_ref,     # (block_b*T_pad, A)    f32
    *, block_b, tau_rows, action_size,
):
    f32 = jnp.float32
    bf16 = jnp.bfloat16
    Lp = w_head_ref.shape[1]

    # x = relu(head(input))                                   -> (block_b, Lp)
    h = jnp.maximum(
        jnp.dot(x_ref[...].astype(bf16), w_head_ref[...],
                preferred_element_type=f32) + b_head_ref[...], 0.0)

    # cos = cos(taus * pis)  (f32 on VPU/EUP)                 -> (rows, Cp)
    cos = jnp.cos(taus_ref[...] * pis_ref[...])

    # cos_x = relu(cos_embedding(cos))                        -> (rows, Lp)
    cos_x = jnp.maximum(
        jnp.dot(cos.astype(bf16), w_cos_ref[...],
                preferred_element_type=f32) + b_cos_ref[...], 0.0)

    # x.unsqueeze(1) * cos_x : replicate each state row across its tau rows
    # via a sublane broadcast (no replication matmul / rep-matrix DMA).
    z = (h[:, None, :] * cos_x.reshape(block_b, tau_rows, Lp)
         ).reshape(block_b * tau_rows, Lp)

    # x = relu(ff_1(x))                                       -> (rows, Lp)
    y = jnp.maximum(
        jnp.dot(z.astype(bf16), w_ff1_ref[...],
                preferred_element_type=f32) + b_ff1_ref[...], 0.0)

    # out = ff_2(x); store only the real action columns (A << 128 typically)
    out = (jnp.dot(y.astype(bf16), w_ff2_ref[...],
                   preferred_element_type=f32) + b_ff2_ref[...])
    out_ref[...] = out[:, :action_size]


# ------------------------------ wrapper ---------------------------------------
def iqn_forward(x, taus, params, num_tau):
    """Returns (quantiles (B, T, A), taus (B, T, 1)) — mirrors IQN.forward."""
    B, S = x.shape
    T = num_tau
    n_cos = params["pis"].shape[1]
    L = params["w_head"].shape[1]
    A = params["w_ff2"].shape[1]

    Lp = _round_up(L, 128)
    Cp = _round_up(n_cos, 128)
    Ap = _round_up(A, 128)
    T_pad = _round_up(T, 8)

    bf16 = jnp.bfloat16
    # Weights bf16 (native MXU rate, half the resident VMEM); biases/pis stay
    # f32.  Zero padding is exact through linear + ReLU; padded rows/cols are
    # never read back.
    w_head = _pad2(params["w_head"], S, Lp).astype(bf16)
    b_head = _pad2(params["b_head"], 1, Lp)
    w_cos = _pad2(params["w_cos"], Cp, Lp).astype(bf16)
    b_cos = _pad2(params["b_cos"], 1, Lp)
    w_ff1 = _pad2(params["w_ff1"], Lp, Lp).astype(bf16)
    b_ff1 = _pad2(params["b_ff1"], 1, Lp)
    w_ff2 = _pad2(params["w_ff2"], Lp, Ap).astype(bf16)
    b_ff2 = _pad2(params["b_ff2"], 1, Ap)
    # padded pis lanes are 0 -> cos(0)=1, but the matching w_cos rows are 0.
    pis = _pad2(params["pis"], 1, Cp)

    # ---- VMEM-aware blocking -------------------------------------------------
    resident_bytes = (2 * (S * Lp + Cp * Lp + Lp * Lp + Lp * Ap)   # bf16 weights
                      + 4 * (3 * Lp + Ap + Cp))                    # f32 biases+pis
    per_row_bytes = 4 * (6 * Lp + Ap + S + 8)   # live f32 intermediates + bf16 casts + IO bufs
    block_b, B_pad = _choose_block(B, T_pad, per_row_bytes, resident_bytes)
    rows = block_b * T_pad
    grid = (B_pad // block_b,)

    est_vmem = 2 * resident_bytes + rows * per_row_bytes + (1 << 20)
    vmem_limit = int(min(64 * 1024 * 1024, max(2 * est_vmem, 16 * 1024 * 1024)))

    # ---- padded inputs -------------------------------------------------------
    x_pad = jnp.pad(x.astype(jnp.float32), ((0, B_pad - B), (0, 0)))
    taus_pad = jnp.pad(taus.astype(jnp.float32),
                       ((0, B_pad - B), (0, T_pad - T)))
    taus_col = taus_pad.reshape(B_pad * T_pad, 1)

    rows_total = B_pad * T_pad
    flops = 2 * (B_pad * S * Lp + rows_total * Lp * (Cp + Lp + Ap))
    bytes_accessed = (4 * (B_pad * S + rows_total + Cp + 3 * Lp + Ap)
                      + 2 * (S * Lp + Cp * Lp + Lp * Lp + Lp * Ap)
                      + 4 * rows_total * A)

    kernel_fn = functools.partial(
        iqn_kernel, block_b=block_b, tau_rows=T_pad, action_size=A)

    def make_call(single_buffer_weights):
        if single_buffer_weights:
            # weights never change across grid steps -> one VMEM buffer is enough
            def resident(shape):
                return pl.BlockSpec(shape, lambda i: (0, 0),
                                    pipeline_mode=pl.Buffered(1))
        else:
            def resident(shape):
                return pl.BlockSpec(shape, lambda i: (0, 0))

        in_specs = [
            pl.BlockSpec((block_b, S), lambda i: (i, 0)),   # x     (per batch block)
            pl.BlockSpec((rows, 1), lambda i: (i, 0)),      # taus  (per batch block)
            resident((1, Cp)),                              # pis
            resident((S, Lp)), resident((1, Lp)),           # head
            resident((Cp, Lp)), resident((1, Lp)),          # cos_embedding
            resident((Lp, Lp)), resident((1, Lp)),          # ff_1
            resident((Lp, Ap)), resident((1, Ap)),          # ff_2
        ]
        out_specs = pl.BlockSpec((rows, A), lambda i: (i, 0))

        return pl.pallas_call(
            kernel_fn,
            out_shape=jax.ShapeDtypeStruct((rows_total, A), jnp.float32),
            grid=grid,
            in_specs=in_specs,
            out_specs=out_specs,
            compiler_params=pltpu.CompilerParams(
                dimension_semantics=("parallel",),
                vmem_limit_bytes=vmem_limit),
            cost_estimate=pl.CostEstimate(
                flops=flops,
                transcendentals=rows_total * Cp,
                bytes_accessed=bytes_accessed),
        )

    args = (x_pad, taus_col, pis,
            w_head, b_head, w_cos, b_cos, w_ff1, b_ff1, w_ff2, b_ff2)
    try:
        out_flat = make_call(True)(*args)
    except Exception:
        # pl.Buffered(1) unsupported on this jax/libtpu -> default double buffering
        out_flat = make_call(False)(*args)

    quantiles = out_flat.reshape(B_pad, T_pad, A)[:B, :T]
    return quantiles, taus.reshape(B, T, 1)


# --------------------------- parameter init -----------------------------------
def init_params(key, state_dim, layer_size, action_size, n_cos=64):
    def linear(key, fan_in, fan_out):
        kw, kb = jax.random.split(key)
        bound = 1.0 / math.sqrt(fan_in)
        # stored pre-transposed: (in, out); bias as (1, out)
        w = jax.random.uniform(kw, (fan_in, fan_out), jnp.float32, -bound, bound)
        b = jax.random.uniform(kb, (1, fan_out), jnp.float32, -bound, bound)
        return w, b

    k_head, k_cos, k_ff1, k_ff2 = jax.random.split(key, 4)
    w_head, b_head = linear(k_head, state_dim, layer_size)
    w_cos, b_cos = linear(k_cos, n_cos, layer_size)
    w_ff1, b_ff1 = linear(k_ff1, layer_size, layer_size)
    w_ff2, b_ff2 = linear(k_ff2, layer_size, action_size)
    pis = (jnp.pi * jnp.arange(1, n_cos + 1, dtype=jnp.float32)).reshape(1, n_cos)
    return dict(
        w_head=w_head, b_head=b_head,
        w_cos=w_cos, b_cos=b_cos,
        w_ff1=w_ff1, b_ff1=b_ff1,
        w_ff2=w_ff2, b_ff2=b_ff2,
        pis=pis,
    )


# ------------------------- pure-JAX reference ---------------------------------
def iqn_reference(x, taus, params, num_tau):
    """Same math, same bf16-operand / f32-accumulate matmuls as the kernel."""
    bf16, f32 = jnp.bfloat16, jnp.float32
    B = x.shape[0]
    T = num_tau
    L = params["w_head"].shape[1]
    A = params["w_ff2"].shape[1]

    def mm(a, w):
        return jnp.dot(a.astype(bf16), w.astype(bf16), preferred_element_type=f32)

    h = jax.nn.relu(mm(x, params["w_head"]) + params["b_head"])         # (B, L)
    cos = jnp.cos(taus.reshape(B * T, 1) * params["pis"])               # (B*T, 64)
    cos_x = jax.nn.relu(mm(cos, params["w_cos"]) + params["b_cos"])     # (B*T, L)
    z = (h[:, None, :] * cos_x.reshape(B, T, L)).reshape(B * T, L)
    y = jax.nn.relu(mm(z, params["w_ff1"]) + params["b_ff1"])
    out = mm(y, params["w_ff2"]) + params["b_ff2"]
    return out.reshape(B, T, A), taus.reshape(B, T, 1)


if __name__ == "__main__":
    # small shapes: state_size=(8,), layer_size=32, action_size=4, batch=2, num_tau=8
    STATE_DIM, LAYER_SIZE, ACTION_SIZE, N_COS = 8, 32, 4, 64
    BATCH, NUM_TAU = 2, 8

    key = jax.random.PRNGKey(0)
    k_params, k_x, k_tau = jax.random.split(key, 3)

    params = init_params(k_params, STATE_DIM, LAYER_SIZE, ACTION_SIZE, N_COS)
    x = jax.random.normal(k_x, (BATCH, STATE_DIM), jnp.float32)
    taus = jax.random.uniform(k_tau, (BATCH, NUM_TAU), jnp.float32)

    quantiles, taus_out = iqn_forward(x, taus, params, NUM_TAU)
    quantiles = jax.block_until_ready(quantiles)
    taus_out = jax.block_until_ready(taus_out)

    q_ref, _ = iqn_reference(x, taus, params, NUM_TAU)
    assert quantiles.shape == (BATCH, NUM_TAU, ACTION_SIZE)
    assert taus_out.shape == (BATCH, NUM_TAU, 1)
    max_err = float(jnp.max(jnp.abs(quantiles - q_ref)))
    assert max_err < 1e-3, f"max abs err {max_err}"

    print("KERNEL_OK")
</pallas_src>

<mosaic_0001>
module attributes {stable_mosaic.version = 11 : i64} {
  func.func @iqn_kernel(%arg0: i32, %arg1: memref<2x8xf32, #tpu.memory_space<vmem>>, %arg2: memref<16x1xf32, #tpu.memory_space<vmem>>, %arg3: memref<1x128xf32, #tpu.memory_space<vmem>>, %arg4: memref<8x128xbf16, #tpu.memory_space<vmem>>, %arg5: memref<1x128xf32, #tpu.memory_space<vmem>>, %arg6: memref<128x128xbf16, #tpu.memory_space<vmem>>, %arg7: memref<1x128xf32, #tpu.memory_space<vmem>>, %arg8: memref<128x128xbf16, #tpu.memory_space<vmem>>, %arg9: memref<1x128xf32, #tpu.memory_space<vmem>>, %arg10: memref<128x128xbf16, #tpu.memory_space<vmem>>, %arg11: memref<1x128xf32, #tpu.memory_space<vmem>>, %arg12: memref<16x4xf32, #tpu.memory_space<vmem>>) attributes {dimension_semantics = [#tpu.dimension_semantics<parallel>], iteration_bounds = array<i64: 1>, scalar_prefetch = 0 : i64, scratch_operands = 0 : i64, tpu.core_type = #tpu.core_type<tc>, window_params = [{transform_indices = @transform_0, window_bounds = array<i64: 2, 8>}, {transform_indices = @transform_1, window_bounds = array<i64: 16, 1>}, {pipeline_mode = #tpu.pipeline_mode<synchronous>, transform_indices = @transform_2, window_bounds = array<i64: 1, 128>}, {pipeline_mode = #tpu.pipeline_mode<synchronous>, transform_indices = @transform_3, window_bounds = array<i64: 8, 128>}, {pipeline_mode = #tpu.pipeline_mode<synchronous>, transform_indices = @transform_4, window_bounds = array<i64: 1, 128>}, {pipeline_mode = #tpu.pipeline_mode<synchronous>, transform_indices = @transform_5, window_bounds = array<i64: 128, 128>}, {pipeline_mode = #tpu.pipeline_mode<synchronous>, transform_indices = @transform_6, window_bounds = array<i64: 1, 128>}, {pipeline_mode = #tpu.pipeline_mode<synchronous>, transform_indices = @transform_7, window_bounds = array<i64: 128, 128>}, {pipeline_mode = #tpu.pipeline_mode<synchronous>, transform_indices = @transform_8, window_bounds = array<i64: 1, 128>}, {pipeline_mode = #tpu.pipeline_mode<synchronous>, transform_indices = @transform_9, window_bounds = array<i64: 128, 128>}, {pipeline_mode = #tpu.pipeline_mode<synchronous>, transform_indices = @transform_10, window_bounds = array<i64: 1, 128>}, {transform_indices = @transform_11, window_bounds = array<i64: 16, 4>}]} {
    %c0 = arith.constant 0 : index
    %c0_0 = arith.constant 0 : index
    %0 = vector.load %arg1[%c0, %c0_0] : memref<2x8xf32, #tpu.memory_space<vmem>>, vector<2x8xf32>
    %1 = arith.truncf %0 : vector<2x8xf32> to vector<2x8xbf16>
    %c0_1 = arith.constant 0 : index
    %c0_2 = arith.constant 0 : index
    %2 = vector.load %arg4[%c0_1, %c0_2] : memref<8x128xbf16, #tpu.memory_space<vmem>>, vector<8x128xbf16>
    %cst = arith.constant dense<0.000000e+00> : vector<2x128xf32>
    %3 = tpu.matmul %1, %2, %cst {dimension_numbers = #tpu.dot_dimension_numbers<[1], [0], [0], [1], [0, 0, 1, 1], [], []>} : vector<2x8xbf16>, vector<8x128xbf16>, vector<2x128xf32> -> vector<2x128xf32>
    %c0_3 = arith.constant 0 : index
    %c0_4 = arith.constant 0 : index
    %4 = vector.load %arg5[%c0_3, %c0_4] : memref<1x128xf32, #tpu.memory_space<vmem>>, vector<1x128xf32>
    %5 = vector.broadcast %4 : vector<1x128xf32> to vector<2x128xf32>
    %6 = arith.addf %3, %5 : vector<2x128xf32>
    %cst_5 = arith.constant 0.000000e+00 : f32
    %7 = vector.broadcast %cst_5 : f32 to vector<2x128xf32>
    %8 = arith.maximumf %6, %7 : vector<2x128xf32>
    %c0_6 = arith.constant 0 : index
    %c0_7 = arith.constant 0 : index
    %9 = vector.load %arg2[%c0_6, %c0_7] : memref<16x1xf32, #tpu.memory_space<vmem>>, vector<16x1xf32>
    %c0_8 = arith.constant 0 : index
    %c0_9 = arith.constant 0 : index
    %10 = vector.load %arg3[%c0_8, %c0_9] : memref<1x128xf32, #tpu.memory_space<vmem>>, vector<1x128xf32>
    %11 = vector.broadcast %9 : vector<16x1xf32> to vector<16x128xf32>
    %12 = vector.broadcast %10 : vector<1x128xf32> to vector<16x128xf32>
    %13 = arith.mulf %11, %12 : vector<16x128xf32>
    %14 = math.cos %13 : vector<16x128xf32>
    %15 = arith.truncf %14 : vector<16x128xf32> to vector<16x128xbf16>
    %c0_10 = arith.constant 0 : index
    %c0_11 = arith.constant 0 : index
    %16 = vector.load %arg6[%c0_10, %c0_11] : memref<128x128xbf16, #tpu.memory_space<vmem>>, vector<128x128xbf16>
    %cst_12 = arith.constant dense<0.000000e+00> : vector<16x128xf32>
    %17 = tpu.matmul %15, %16, %cst_12 {dimension_numbers = #tpu.dot_dimension_numbers<[1], [0], [0], [1], [0, 0, 1, 1], [], []>} : vector<16x128xbf16>, vector<128x128xbf16>, vector<16x128xf32> -> vector<16x128xf32>
    %c0_13 = arith.constant 0 : index
    %c0_14 = arith.constant 0 : index
    %18 = vector.load %arg7[%c0_13, %c0_14] : memref<1x128xf32, #tpu.memory_space<vmem>>, vector<1x128xf32>
    %19 = vector.broadcast %18 : vector<1x128xf32> to vector<16x128xf32>
    %20 = arith.addf %17, %19 : vector<16x128xf32>
    %cst_15 = arith.constant 0.000000e+00 : f32
    %21 = vector.broadcast %cst_15 : f32 to vector<16x128xf32>
    %22 = arith.maximumf %20, %21 : vector<16x128xf32>
    %23 = vector.shape_cast %8 : vector<2x128xf32> to vector<2x1x128xf32>
    %24 = vector.shape_cast %22 : vector<16x128xf32> to vector<2x8x128xf32>
    %25 = vector.broadcast %23 : vector<2x1x128xf32> to vector<2x8x128xf32>
    %26 = arith.mulf %25, %24 : vector<2x8x128xf32>
    %27 = vector.shape_cast %26 : vector<2x8x128xf32> to vector<16x128xf32>
    %28 = arith.truncf %27 : vector<16x128xf32> to vector<16x128xbf16>
    %c0_16 = arith.constant 0 : index
    %c0_17 = arith.constant 0 : index
    %29 = vector.load %arg8[%c0_16, %c0_17] : memref<128x128xbf16, #tpu.memory_space<vmem>>, vector<128x128xbf16>
    %cst_18 = arith.constant dense<0.000000e+00> : vector<16x128xf32>
    %30 = tpu.matmul %28, %29, %cst_18 {dimension_numbers = #tpu.dot_dimension_numbers<[1], [0], [0], [1], [0, 0, 1, 1], [], []>} : vector<16x128xbf16>, vector<128x128xbf16>, vector<16x128xf32> -> vector<16x128xf32>
    %c0_19 = arith.constant 0 : index
    %c0_20 = arith.constant 0 : index
    %31 = vector.load %arg9[%c0_19, %c0_20] : memref<1x128xf32, #tpu.memory_space<vmem>>, vector<1x128xf32>
    %32 = vector.broadcast %31 : vector<1x128xf32> to vector<16x128xf32>
    %33 = arith.addf %30, %32 : vector<16x128xf32>
    %cst_21 = arith.constant 0.000000e+00 : f32
    %34 = vector.broadcast %cst_21 : f32 to vector<16x128xf32>
    %35 = arith.maximumf %33, %34 : vector<16x128xf32>
    %36 = arith.truncf %35 : vector<16x128xf32> to vector<16x128xbf16>
    %c0_22 = arith.constant 0 : index
    %c0_23 = arith.constant 0 : index
    %37 = vector.load %arg10[%c0_22, %c0_23] : memref<128x128xbf16, #tpu.memory_space<vmem>>, vector<128x128xbf16>
    %cst_24 = arith.constant dense<0.000000e+00> : vector<16x128xf32>
    %38 = tpu.matmul %36, %37, %cst_24 {dimension_numbers = #tpu.dot_dimension_numbers<[1], [0], [0], [1], [0, 0, 1, 1], [], []>} : vector<16x128xbf16>, vector<128x128xbf16>, vector<16x128xf32> -> vector<16x128xf32>
    %c0_25 = arith.constant 0 : index
    %c0_26 = arith.constant 0 : index
    %39 = vector.load %arg11[%c0_25, %c0_26] : memref<1x128xf32, #tpu.memory_space<vmem>>, vector<1x128xf32>
    %40 = vector.broadcast %39 : vector<1x128xf32> to vector<16x128xf32>
    %41 = arith.addf %38, %40 : vector<16x128xf32>
    %42 = vector.extract_strided_slice %41 {offsets = [0, 0], sizes = [16, 4], strides = [1, 1]} : vector<16x128xf32> to vector<16x4xf32>
    %c0_27 = arith.constant 0 : index
    %c0_28 = arith.constant 0 : index
    %43 = vector.load %arg12[%c0_27, %c0_28] : memref<16x4xf32, #tpu.memory_space<vmem>>, vector<16x4xf32>
    tpu.vector_store %arg12[%c0_27, %c0_28], %42 {strides = array<i32>} : memref<16x4xf32, #tpu.memory_space<vmem>>, vector<16x4xf32>,
    return
  }
  func.func @transform_0(%arg0: i32) -> (i32, i32) {
    %c0_i32 = arith.constant 0 : i32
    %c0_i32_0 = arith.constant 0 : i32
    return %arg0, %c0_i32 : i32, i32
  }
  func.func @transform_1(%arg0: i32) -> (i32, i32) {
    %c0_i32 = arith.constant 0 : i32
    %c0_i32_0 = arith.constant 0 : i32
    return %arg0, %c0_i32 : i32, i32
  }
  func.func @transform_2(%arg0: i32) -> (i32, i32) {
    %c0_i32 = arith.constant 0 : i32
    %c0_i32_0 = arith.constant 0 : i32
    %c0_i32_1 = arith.constant 0 : i32
    return %c0_i32, %c0_i32_0 : i32, i32
  }
  func.func @transform_3(%arg0: i32) -> (i32, i32) {
    %c0_i32 = arith.constant 0 : i32
    %c0_i32_0 = arith.constant 0 : i32
    %c0_i32_1 = arith.constant 0 : i32
    return %c0_i32, %c0_i32_0 : i32, i32
  }
  func.func @transform_4(%arg0: i32) -> (i32, i32) {
    %c0_i32 = arith.constant 0 : i32
    %c0_i32_0 = arith.constant 0 : i32
    %c0_i32_1 = arith.constant 0 : i32
    return %c0_i32, %c0_i32_0 : i32, i32
  }
  func.func @transform_5(%arg0: i32) -> (i32, i32) {
    %c0_i32 = arith.constant 0 : i32
    %c0_i32_0 = arith.constant 0 : i32
    %c0_i32_1 = arith.constant 0 : i32
    return %c0_i32, %c0_i32_0 : i32, i32
  }
  func.func @transform_6(%arg0: i32) -> (i32, i32) {
    %c0_i32 = arith.constant 0 : i32
    %c0_i32_0 = arith.constant 0 : i32
    %c0_i32_1 = arith.constant 0 : i32
    return %c0_i32, %c0_i32_0 : i32, i32
  }
  func.func @transform_7(%arg0: i32) -> (i32, i32) {
    %c0_i32 = arith.constant 0 : i32
    %c0_i32_0 = arith.constant 0 : i32
    %c0_i32_1 = arith.constant 0 : i32
    return %c0_i32, %c0_i32_0 : i32, i32
  }
  func.func @transform_8(%arg0: i32) -> (i32, i32) {
    %c0_i32 = arith.constant 0 : i32
    %c0_i32_0 = arith.constant 0 : i32
    %c0_i32_1 = arith.constant 0 : i32
    return %c0_i32, %c0_i32_0 : i32, i32
  }
  func.func @transform_9(%arg0: i32) -> (i32, i32) {
    %c0_i32 = arith.constant 0 : i32
    %c0_i32_0 = arith.constant 0 : i32
    %c0_i32_1 = arith.constant 0 : i32
    return %c0_i32, %c0_i32_0 : i32, i32
  }
  func.func @transform_10(%arg0: i32) -> (i32, i32) {
    %c0_i32 = arith.constant 0 : i32
    %c0_i32_0 = arith.constant 0 : i32
    %c0_i32_1 = arith.constant 0 : i32
    return %c0_i32, %c0_i32_0 : i32, i32
  }
  func.func @transform_11(%arg0: i32) -> (i32, i32) {
    %c0_i32 = arith.constant 0 : i32
    %c0_i32_0 = arith.constant 0 : i32
    return %arg0, %c0_i32 : i32, i32
  }
}

module attributes {stable_mosaic.version = 11 : i64} {
  func.func @iqn_kernel(%arg0: i32, %arg1: memref<2x8xf32, #tpu.memory_space<vmem>>, %arg2: memref<16x1xf32, #tpu.memory_space<vmem>>, %arg3: memref<1x128xf32, #tpu.memory_space<vmem>>, %arg4: memref<8x128xbf16, #tpu.memory_space<vmem>>, %arg5: memref<1x128xf32, #tpu.memory_space<vmem>>, %arg6: memref<128x128xbf16, #tpu.memory_space<vmem>>, %arg7: memref<1x128xf32, #tpu.memory_space<vmem>>, %arg8: memref<128x128xbf16, #tpu.memory_space<vmem>>, %arg9: memref<1x128xf32, #tpu.memory_space<vmem>>, %arg10: memref<128x128xbf16, #tpu.memory_space<vmem>>, %arg11: memref<1x128xf32, #tpu.memory_space<vmem>>, %arg12: memref<16x4xf32, #tpu.memory_space<vmem>>) attributes {dimension_semantics = [#tpu.dimension_semantics<parallel>], iteration_bounds = array<i64: 1>, scalar_prefetch = 0 : i64, scratch_operands = 0 : i64, tpu.core_type = #tpu.core_type<tc>, window_params = [{transform_indices = @transform_0, window_bounds = array<i64: 2, 8>}, {transform_indices = @transform_1, window_bounds = array<i64: 16, 1>}, {pipeline_mode = #tpu.pipeline_mode<synchronous>, transform_indices = @transform_2, window_bounds = array<i64: 1, 128>}, {pipeline_mode = #tpu.pipeline_mode<synchronous>, transform_indices = @transform_3, window_bounds = array<i64: 8, 128>}, {pipeline_mode = #tpu.pipeline_mode<synchronous>, transform_indices = @transform_4, window_bounds = array<i64: 1, 128>}, {pipeline_mode = #tpu.pipeline_mode<synchronous>, transform_indices = @transform_5, window_bounds = array<i64: 128, 128>}, {pipeline_mode = #tpu.pipeline_mode<synchronous>, transform_indices = @transform_6, window_bounds = array<i64: 1, 128>}, {pipeline_mode = #tpu.pipeline_mode<synchronous>, transform_indices = @transform_7, window_bounds = array<i64: 128, 128>}, {pipeline_mode = #tpu.pipeline_mode<synchronous>, transform_indices = @transform_8, window_bounds = array<i64: 1, 128>}, {pipeline_mode = #tpu.pipeline_mode<synchronous>, transform_indices = @transform_9, window_bounds = array<i64: 128, 128>}, {pipeline_mode = #tpu.pipeline_mode<synchronous>, transform_indices = @transform_10, window_bounds = array<i64: 1, 128>}, {transform_indices = @transform_11, window_bounds = array<i64: 16, 4>}]} {
    %c0 = arith.constant 0 : index
    %c0_0 = arith.constant 0 : index
    %0 = vector.load %arg1[%c0, %c0_0] : memref<2x8xf32, #tpu.memory_space<vmem>>, vector<2x8xf32>
    %1 = arith.truncf %0 : vector<2x8xf32> to vector<2x8xbf16>
    %c0_1 = arith.constant 0 : index
    %c0_2 = arith.constant 0 : index
    %2 = vector.load %arg4[%c0_1, %c0_2] : memref<8x128xbf16, #tpu.memory_space<vmem>>, vector<8x128xbf16>
    %cst = arith.constant dense<0.000000e+00> : vector<2x128xf32>
    %3 = tpu.matmul %1, %2, %cst {dimension_numbers = #tpu.dot_dimension_numbers<[1], [0], [0], [1], [0, 0, 1, 1], [], []>} : vector<2x8xbf16>, vector<8x128xbf16>, vector<2x128xf32> -> vector<2x128xf32>
    %c0_3 = arith.constant 0 : index
    %c0_4 = arith.constant 0 : index
    %4 = vector.load %arg5[%c0_3, %c0_4] : memref<1x128xf32, #tpu.memory_space<vmem>>, vector<1x128xf32>
    %5 = vector.broadcast %4 : vector<1x128xf32> to vector<2x128xf32>
    %6 = arith.addf %3, %5 : vector<2x128xf32>
    %cst_5 = arith.constant 0.000000e+00 : f32
    %7 = vector.broadcast %cst_5 : f32 to vector<2x128xf32>
    %8 = arith.maximumf %6, %7 : vector<2x128xf32>
    %c0_6 = arith.constant 0 : index
    %c0_7 = arith.constant 0 : index
    %9 = vector.load %arg2[%c0_6, %c0_7] : memref<16x1xf32, #tpu.memory_space<vmem>>, vector<16x1xf32>
    %c0_8 = arith.constant 0 : index
    %c0_9 = arith.constant 0 : index
    %10 = vector.load %arg3[%c0_8, %c0_9] : memref<1x128xf32, #tpu.memory_space<vmem>>, vector<1x128xf32>
    %11 = vector.broadcast %9 : vector<16x1xf32> to vector<16x128xf32>
    %12 = vector.broadcast %10 : vector<1x128xf32> to vector<16x128xf32>
    %13 = arith.mulf %11, %12 : vector<16x128xf32>
    %14 = math.cos %13 : vector<16x128xf32>
    %15 = arith.truncf %14 : vector<16x128xf32> to vector<16x128xbf16>
    %c0_10 = arith.constant 0 : index
    %c0_11 = arith.constant 0 : index
    %16 = vector.load %arg6[%c0_10, %c0_11] : memref<128x128xbf16, #tpu.memory_space<vmem>>, vector<128x128xbf16>
    %cst_12 = arith.constant dense<0.000000e+00> : vector<16x128xf32>
    %17 = tpu.matmul %15, %16, %cst_12 {dimension_numbers = #tpu.dot_dimension_numbers<[1], [0], [0], [1], [0, 0, 1, 1], [], []>} : vector<16x128xbf16>, vector<128x128xbf16>, vector<16x128xf32> -> vector<16x128xf32>
    %c0_13 = arith.constant 0 : index
    %c0_14 = arith.constant 0 : index
    %18 = vector.load %arg7[%c0_13, %c0_14] : memref<1x128xf32, #tpu.memory_space<vmem>>, vector<1x128xf32>
    %19 = vector.broadcast %18 : vector<1x128xf32> to vector<16x128xf32>
    %20 = arith.addf %17, %19 : vector<16x128xf32>
    %cst_15 = arith.constant 0.000000e+00 : f32
    %21 = vector.broadcast %cst_15 : f32 to vector<16x128xf32>
    %22 = arith.maximumf %20, %21 : vector<16x128xf32>
    %23 = vector.shape_cast %8 : vector<2x128xf32> to vector<2x1x128xf32>
    %24 = vector.shape_cast %22 : vector<16x128xf32> to vector<2x8x128xf32>
    %25 = vector.broadcast %23 : vector<2x1x128xf32> to vector<2x8x128xf32>
    %26 = arith.mulf %25, %24 : vector<2x8x128xf32>
    %27 = vector.shape_cast %26 : vector<2x8x128xf32> to vector<16x128xf32>
    %28 = arith.truncf %27 : vector<16x128xf32> to vector<16x128xbf16>
    %c0_16 = arith.constant 0 : index
    %c0_17 = arith.constant 0 : index
    %29 = vector.load %arg8[%c0_16, %c0_17] : memref<128x128xbf16, #tpu.memory_space<vmem>>, vector<128x128xbf16>
    %cst_18 = arith.constant dense<0.000000e+00> : vector<16x128xf32>
    %30 = tpu.matmul %28, %29, %cst_18 {dimension_numbers = #tpu.dot_dimension_numbers<[1], [0], [0], [1], [0, 0, 1, 1], [], []>} : vector<16x128xbf16>, vector<128x128xbf16>, vector<16x128xf32> -> vector<16x128xf32>
    %c0_19 = arith.constant 0 : index
    %c0_20 = arith.constant 0 : index
    %31 = vector.load %arg9[%c0_19, %c0_20] : memref<1x128xf32, #tpu.memory_space<vmem>>, vector<1x128xf32>
    %32 = vector.broadcast %31 : vector<1x128xf32> to vector<16x128xf32>
    %33 = arith.addf %30, %32 : vector<16x128xf32>
    %cst_21 = arith.constant 0.000000e+00 : f32
    %34 = vector.broadcast %cst_21 : f32 to vector<16x128xf32>
    %35 = arith.maximumf %33, %34 : vector<16x128xf32>
    %36 = arith.truncf %35 : vector<16x128xf32> to vector<16x128xbf16>
    %c0_22 = arith.constant 0 : index
    %c0_23 = arith.constant 0 : index
    %37 = vector.load %arg10[%c0_22, %c0_23] : memref<128x128xbf16, #tpu.memory_space<vmem>>, vector<128x128xbf16>
    %cst_24 = arith.constant dense<0.000000e+00> : vector<16x128xf32>
    %38 = tpu.matmul %36, %37, %cst_24 {dimension_numbers = #tpu.dot_dimension_numbers<[1], [0], [0], [1], [0, 0, 1, 1], [], []>} : vector<16x128xbf16>, vector<128x128xbf16>, vector<16x128xf32> -> vector<16x128xf32>
    %c0_25 = arith.constant 0 : index
    %c0_26 = arith.constant 0 : index
    %39 = vector.load %arg11[%c0_25, %c0_26] : memref<1x128xf32, #tpu.memory_space<vmem>>, vector<1x128xf32>
    %40 = vector.broadcast %39 : vector<1x128xf32> to vector<16x128xf32>
    %41 = arith.addf %38, %40 : vector<16x128xf32>
    %42 = vector.extract_strided_slice %41 {offsets = [0, 0], sizes = [16, 4], strides = [1, 1]} : vector<16x128xf32> to vector<16x4xf32>
    %c0_27 = arith.constant 0 : index
    %c0_28 = arith.constant 0 : index
    %43 = vector.load %arg12[%c0_27, %c0_28] : memref<16x4xf32, #tpu.memory_space<vmem>>, vector<16x4xf32>
    tpu.vector_store %arg12[%c0_27, %c0_28], %42 {strides = array<i32>} : memref<16x4xf32, #tpu.memory_space<vmem>>, vector<16x4xf32>,
    return
  }
  func.func @transform_0(%arg0: i32) -> (i32, i32) {
    %c0_i32 = arith.constant 0 : i32
    %c0_i32_0 = arith.constant 0 : i32
    return %arg0, %c0_i32 : i32, i32
  }
  func.func @transform_1(%arg0: i32) -> (i32, i32) {
    %c0_i32 = arith.constant 0 : i32
    %c0_i32_0 = arith.constant 0 : i32
    return %arg0, %c0_i32 : i32, i32
  }
  func.func @transform_2(%arg0: i32) -> (i32, i32) {
    %c0_i32 = arith.constant 0 : i32
    %c0_i32_0 = arith.constant 0 : i32
    %c0_i32_1 = arith.constant 0 : i32
    return %c0_i32, %c0_i32_0 : i32, i32
  }
  func.func @transform_3(%arg0: i32) -> (i32, i32) {
    %c0_i32 = arith.constant 0 : i32
    %c0_i32_0 = arith.constant 0 : i32
    %c0_i32_1 = arith.constant 0 : i32
    return %c0_i32, %c0_i32_0 : i32, i32
  }
  func.func @transform_4(%arg0: i32) -> (i32, i32) {
    %c0_i32 = arith.constant 0 : i32
    %c0_i32_0 = arith.constant 0 : i32
    %c0_i32_1 = arith.constant 0 : i32
    return %c0_i32, %c0_i32_0 : i32, i32
  }
  func.func @transform_5(%arg0: i32) -> (i32, i32) {
    %c0_i32 = arith.constant 0 : i32
    %c0_i32_0 = arith.constant 0 : i32
    %c0_i32_1 = arith.constant 0 : i32
    return %c0_i32, %c0_i32_0 : i32, i32
  }
  func.func @transform_6(%arg0: i32) -> (i32, i32) {
    %c0_i32 = arith.constant 0 : i32
    %c0_i32_0 = arith.constant 0 : i32
    %c0_i32_1 = arith.constant 0 : i32
    return %c0_i32, %c0_i32_0 : i32, i32
  }
  func.func @transform_7(%arg0: i32) -> (i32, i32) {
    %c0_i32 = arith.constant 0 : i32
    %c0_i32_0 = arith.constant 0 : i32
    %c0_i32_1 = arith.constant 0 : i32
    return %c0_i32, %c0_i32_0 : i32, i32
  }
  func.func @transform_8(%arg0: i32) -> (i32, i32) {
    %c0_i32 = arith.constant 0 : i32
    %c0_i32_0 = arith.constant 0 : i32
    %c0_i32_1 = arith.constant 0 : i32
    return %c0_i32, %c0_i32_0 : i32, i32
  }
  func.func @transform_9(%arg0: i32) -> (i32, i32) {
    %c0_i32 = arith.constant 0 : i32
    %c0_i32_0 = arith.constant 0 : i32
    %c0_i32_1 = arith.constant 0 : i32
    return %c0_i32, %c0_i32_0 : i32, i32
  }
  func.func @transform_10(%arg0: i32) -> (i32, i32) {
    %c0_i32 = arith.constant 0 : i32
    %c0_i32_0 = arith.constant 0 : i32
    %c0_i32_1 = arith.constant 0 : i32
    return %c0_i32, %c0_i32_0 : i32, i32
  }
  func.func @transform_11(%arg0: i32) -> (i32, i32) {
    %c0_i32 = arith.constant 0 : i32
    %c0_i32_0 = arith.constant 0 : i32
    return %arg0, %c0_i32 : i32, i32
  }
}

</mosaic_0001>

<llo_original>
// kernel: tpu_custom_call.1
$region0: #{tpu_custom_call.1}
  #allocation0 [shape = 'u32[]', space=smem, size = 0x4, offset = 0x4, fixed_abs, tag = 'smem constant byte address 0x4 - core index']
  #allocation1 [shape = 'u32[144,128]{1,0:T(1,128)}', space=vmem, size = 0x12000, scoped, tag = 'internal scratch']
  %s0 = inlined_call_operand.vmem [shape: f32[2,8], index: 0, kind: input, shape index: {}]
  %s1 = inlined_call_operand.vmem [shape: f32[16,1], index: 1, kind: input, shape index: {}]
  %s2 = inlined_call_operand.vmem [shape: f32[1,128], index: 2, kind: input, shape index: {}]
  %s3 = inlined_call_operand.vmem [shape: bf16[8,128], index: 3, kind: input, shape index: {}]
  %s4 = inlined_call_operand.vmem [shape: f32[1,128], index: 4, kind: input, shape index: {}]
  %s5 = inlined_call_operand.hbm [shape: bf16[128,128], index: 5, kind: input, shape index: {}]
  %s6 = inlined_call_operand.vmem [shape: f32[1,128], index: 6, kind: input, shape index: {}]
  %s7 = inlined_call_operand.hbm [shape: bf16[128,128], index: 7, kind: input, shape index: {}]
  %s8 = inlined_call_operand.vmem [shape: f32[1,128], index: 8, kind: input, shape index: {}]
  %s9 = inlined_call_operand.hbm [shape: bf16[128,128], index: 9, kind: input, shape index: {}]
  %s10 = inlined_call_operand.vmem [shape: f32[1,128], index: 10, kind: input, shape index: {}]
  %s11 = inlined_call_operand.vmem [shape: f32[16,4], index: 11, kind: output, shape index: {}]
  %s12 = sld [smem:[#allocation0]]
  $region66: #{tpu_custom_call.1} parent=0
    _
  %s14 = ssub.s32 1, %s12
  %s15 = scalar_select 0, %s14, %s12
  $region1: #{tpu_custom_call.1} parent=0
    #allocation2 [shape = 'u8[32768]{0}', space=vmem, size = 0x8000, scoped, tag = 'input window, operand 5, single buffered']
    #allocation3 [shape = 's32[1]{0}', space=sflag, size = 0x4, scoped, tag = 'scoped memory for tpu_custom_call.1']
    #allocation4 [shape = 'u8[32768]{0}', space=vmem, size = 0x8000, scoped, tag = 'input window, operand 7, single buffered']
    #allocation5 [shape = 's32[1]{0}', space=sflag, size = 0x4, scoped, tag = 'scoped memory for tpu_custom_call.1']
    #allocation6 [shape = 'u8[32768]{0}', space=vmem, size = 0x8000, scoped, tag = 'input window, operand 9, single buffered']
    %16 = vsyncpa [#allocation3], 0
    %17 = vsyncpa [#allocation5], 0
    // Predicated region
    $region2: #{tpu_custom_call.1} parent=1 // pred_check
      _
    $region3: #{tpu_custom_call.1} parent=1 // pred_check_branch
      %19 = sbr.rel (0) target = $region5
    $region4: #{tpu_custom_call.1} parent=1 // pred_region
      _
    $region5: #{tpu_custom_call.1} parent=1 // pred_fallthru
      _
    // Predicated region
    $region6: #{tpu_custom_call.1} parent=1 // pred_check
      _
    $region7: #{tpu_custom_call.1} parent=1 // pred_check_branch
      %21 = sbr.rel (0) target = $region9
    $region8: #{tpu_custom_call.1} parent=1 // pred_region
      _
    $region9: #{tpu_custom_call.1} parent=1 // pred_fallthru
      _
    // Predicated region
    $region10: #{tpu_custom_call.1} parent=1 // pred_check
      _
    $region11: #{tpu_custom_call.1} parent=1 // pred_check_branch
      %23 = sbr.rel (0) target = $region13
    $region12: #{tpu_custom_call.1} parent=1 // pred_region
      _
    $region13: #{tpu_custom_call.1} parent=1 // pred_fallthru
      _
    // Predicated region
    $region14: #{tpu_custom_call.1} parent=1 // pred_check
      _
    $region15: #{tpu_custom_call.1} parent=1 // pred_check_branch
      %25 = sbr.rel (0) target = $region17
    $region16: #{tpu_custom_call.1} parent=1 // pred_region
      _
    $region17: #{tpu_custom_call.1} parent=1 // pred_fallthru
      _
    // Predicated region
    $region18: #{tpu_custom_call.1} parent=1 // pred_check
      _
    $region19: #{tpu_custom_call.1} parent=1 // pred_check_branch
      %27 = sbr.rel (0) target = $region21
    $region20: #{tpu_custom_call.1} parent=1 // pred_region
      _
    $region21: #{tpu_custom_call.1} parent=1 // pred_fallthru
      _
    // Predicated region
    $region22: #{tpu_custom_call.1} parent=1 // pred_check
      _
    $region23: #{tpu_custom_call.1} parent=1 // pred_check_branch
      %29 = sbr.rel (0) target = $region25
    $region24: #{tpu_custom_call.1} parent=1 // pred_region
      %s31 = ssub.s32 1024, 1024
      %32 = vsyncadd [#allocation3], %s31
      %s33 = sshll.u32 [#allocation2], 4
      %s34 = int_to_ptr.vmem [resolvable:$true] %s33
      %39 = dma.hbm_to_vmem [thread:$0]  %s5, 1024, %s34, [#allocation3], 64, 64, 4
    $region25: #{tpu_custom_call.1} parent=1 // pred_fallthru
      _
    // Predicated region
    $region26: #{tpu_custom_call.1} parent=1 // pred_check
      _
    $region27: #{tpu_custom_call.1} parent=1 // pred_check_branch
      %41 = sbr.rel (0) target = $region29
    $region28: #{tpu_custom_call.1} parent=1 // pred_region
      _
    $region29: #{tpu_custom_call.1} parent=1 // pred_fallthru
      _
    // Predicated region
    $region30: #{tpu_custom_call.1} parent=1 // pred_check
      _
    $region31: #{tpu_custom_call.1} parent=1 // pred_check_branch
      %43 = sbr.rel (0) target = $region33
    $region32: #{tpu_custom_call.1} parent=1 // pred_region
      %s45 = ssub.s32 1024, 1024
      %46 = vsyncadd [#allocation5], %s45
      %s47 = sshll.u32 [#allocation4], 4
      %s48 = int_to_ptr.vmem [resolvable:$true] %s47
      %53 = dma.hbm_to_vmem [thread:$0]  %s7, 1024, %s48, [#allocation5], 64, 64, 4
    $region33: #{tpu_custom_call.1} parent=1 // pred_fallthru
      _
    // Predicated region
    $region34: #{tpu_custom_call.1} parent=1 // pred_check
      _
    $region35: #{tpu_custom_call.1} parent=1 // pred_check_branch
      %55 = sbr.rel (0) target = $region37
    $region36: #{tpu_custom_call.1} parent=1 // pred_region
      _
    $region37: #{tpu_custom_call.1} parent=1 // pred_fallthru
      _
    // Predicated region
    $region38: #{tpu_custom_call.1} parent=1 // pred_check
      _
    $region39: #{tpu_custom_call.1} parent=1 // pred_check_branch
      %57 = sbr.rel (0) target = $region41
    $region40: #{tpu_custom_call.1} parent=1 // pred_region
      %s59 = ssub.s32 1024, 1024
      %60 = vsyncadd [#allocation5], %s59
      %s61 = sshll.u32 [#allocation6], 4
      %s62 = int_to_ptr.vmem [resolvable:$true] %s61
      %67 = dma.hbm_to_vmem [thread:$0]  %s9, 1024, %s62, [#allocation5], 64, 64, 4
    $region41: #{tpu_custom_call.1} parent=1 // pred_fallthru
      _
    // Predicated region
    $region42: #{tpu_custom_call.1} parent=1 // pred_check
      _
    $region43: #{tpu_custom_call.1} parent=1 // pred_check_branch
      %69 = sbr.rel (0) target = $region45
    $region44: #{tpu_custom_call.1} parent=1 // pred_region
      _
    $region45: #{tpu_custom_call.1} parent=1 // pred_fallthru
      _
    // Predicated region
    $region46: #{tpu_custom_call.1} parent=1 // pred_check
      _
    $region47: #{tpu_custom_call.1} parent=1 // pred_check_branch
      %71 = sbr.rel (0) target = $region49
    $region48: #{tpu_custom_call.1} parent=1 // pred_region
      %72 = dma.done [#allocation3], 1024
    $region49: #{tpu_custom_call.1} parent=1 // pred_fallthru
      _
    // Predicated region
    $region50: #{tpu_custom_call.1} parent=1 // pred_check
      _
    $region51: #{tpu_custom_call.1} parent=1 // pred_check_branch
      %74 = sbr.rel (0) target = $region53
    $region52: #{tpu_custom_call.1} parent=1 // pred_region
      %75 = dma.done [#allocation5], 1024
    $region53: #{tpu_custom_call.1} parent=1 // pred_fallthru
      _
    // Predicated region
    $region54: #{tpu_custom_call.1} parent=1 // pred_check
      _
    $region55: #{tpu_custom_call.1} parent=1 // pred_check_branch
      %77 = sbr.rel (0) target = $region57
    $region56: #{tpu_custom_call.1} parent=1 // pred_region
      %78 = dma.done [#allocation5], 1024
    $region57: #{tpu_custom_call.1} parent=1 // pred_fallthru
      _
    %v80 = vld [vmem:[%s0] sm:$0x3]
    %v81 = vpack.c.bf16 %v80, %v80
    %v82 = vld [vmem:[%s3] sm:$0xf]
    %v83 = vld [vmem:[%s4] sm:$0x1]
    %v85 = vlaneseq
    %v86 = vshrl.u32 %v85, 7
    %v87 = vsub.s32 0, %v86
    %v88 = vrot.slane %v83, %v87
    %vm90 = vcmask 64512
    %v92 = vsel %vm90, %v81, 0
    %vm94 = vcmask 1043456
    %v96 = vsel %vm94, %v82, 0
    %98 = vmatprep.subr.bf16.mxu0 0
    %99 = vmatpush1.bf16.msra.mxu0 %v96
    %100 = vmatprep.subr.bf16.mxu0 0
    %101 = vmatpush1.bf16.msra.mxu0 0
    %102 = vmatprep.subr.bf16.mxu0 0
    %103 = vmatpush1.bf16.msra.mxu0 0
    %104 = vmatprep.subr.bf16.mxu0 0
    %105 = vmatpush1.bf16.msra.mxu0 0
    %106 = vmatprep.subr.bf16.mxu0 0
    %107 = vmatpush1.bf16.msra.mxu0 0
    %108 = vmatprep.subr.bf16.mxu0 0
    %109 = vmatpush1.bf16.msra.mxu0 0
    %110 = vmatprep.subr.bf16.mxu0 0
    %111 = vmatpush1.bf16.msra.mxu0 0
    %112 = vmatprep.subr.bf16.mxu0 0
    %113 = vmatpush1.bf16.msra.mxu0 0
    %114 = vmatprep.subr.bf16.mxu0 0
    %115 = vmatpush1.bf16.msra.mxu0 0
    %116 = vmatprep.subr.bf16.mxu0 0
    %117 = vmatpush1.bf16.msra.mxu0 0
    %118 = vmatprep.subr.bf16.mxu0 0
    %119 = vmatpush1.bf16.msra.mxu0 0
    %120 = vmatprep.subr.bf16.mxu0 0
    %121 = vmatpush1.bf16.msra.mxu0 0
    %122 = vmatprep.subr.bf16.mxu0 0
    %123 = vmatpush1.bf16.msra.mxu0 0
    %124 = vmatprep.subr.bf16.mxu0 0
    %125 = vmatpush1.bf16.msra.mxu0 0
    %126 = vmatprep.subr.bf16.mxu0 0
    %127 = vmatpush1.bf16.msra.mxu0 0
    %128 = vmatprep.subr.bf16.mxu0 0
    %129 = vmatpush1.bf16.msra.mxu0 0
    %130 = vmatprep.mubr.bf16.mxu0 0
    %131 = vmatmul.mubr.bf16.gmra.mrb[0].mxu0 %v92
    %v132 = vpop.f32.mrb[0].mxu0
    %v133 = vadd.f32 %v88, %v132
    %v134 = vpop.f32.mrb[0].mxu0
    %v135 = vpop.f32.mrb[0].mxu0
    %v136 = vpop.f32.mrb[0].mxu0
    %137 = vdwg.mxu0
    %v138 = vmax.f32 %v133, 0.0
    %v139 = vld [vmem:[%s1] sm:$0xff]
    %v140 = vld [vmem:[%s1 + $0x8] sm:$0xff]
    %v141 = vld [vmem:[%s2] sm:$0x1]
    %143 = vset.pattern.permute.xlu0 0
    %144 = vperm.xlu0 %143, %v139
    %v145 = vpop.permute.xlu0 %144
    %148 = vset.pattern.permute.xlu0 0
    %149 = vperm.xlu0 %148, %v140
    %v150 = vpop.permute.xlu0 %149
    %v153 = vlaneseq
    %v154 = vshrl.u32 %v153, 7
    %v155 = vsub.s32 0, %v154
    %v156 = vrot.slane %v141, %v155
    %v158 = vmul.f32 %v145, %v156
    %v159 = vmul.f32 %v150, %v156
    %v160 = vand.u32 2147483647, %v158
    %vm161 = vcmp.le.f32.partialorder %v160, 0.7853982
    %vm162 = vcmp.lt.s32.totalorder %v158, 0
    %v163 = vand.u32 %v158, 2139095040
    %v164 = vshrl.u32 %v163, 23
    %v165 = vsub.s32 %v164, 127
    %v166 = vand.u32 2147483647, %v158
    %v167 = vand.u32 %v166, 8388607
    %v168 = vor.u32 %v167, 8388608
    %v169 = vsub.s32 0, %v168
    %v170 = vadd.s32 %v165, 1
    %vm171 = vcmp.gt.s32.totalorder %v170, 0
    %v172 = vsel %vm171, %v170, 0
    %v173 = vshrl.u32 %v172, 5
    %v174 = vand.u32 %v172, 31
    %v175 = vsub.s32 32, %v174
    %v176 = vshrl.u32 683565275, %v175
    %v177 = vshll.u32 683565275, %v174
    %v178 = vshrl.u32 2475754826, %v175
    %v179 = vor.u32 %v177, %v178
    %v180 = vshll.u32 2475754826, %v174
    %v181 = vshrl.u32 2131351028, %v175
    %v182 = vor.u32 %v180, %v181
    %v183 = vshll.u32 2131351028, %v174
    %v184 = vshrl.u32 2102212464, %v175
    %v185 = vor.u32 %v183, %v184
    %v186 = vshll.u32 2102212464, %v174
    %v187 = vshrl.u32 920167782, %v175
    %v188 = vor.u32 %v186, %v187
    %v189 = vshll.u32 920167782, %v174
    %v190 = vshrl.u32 1326507024, %v175
    %v191 = vor.u32 %v189, %v190
    %vm192 = vcmp.lt.s32.totalorder %v173, 1
    %vm193 = vcmp.lt.s32.totalorder %v173, 2
    %vm194 = vcmp.lt.s32.totalorder %v173, 3
    %vm195 = vcmp.lt.s32.totalorder %v173, 4
    %v196 = vsel %vm192, %v176, %v179
    %v197 = vsel %vm195, %v185, 2102212464
    %v198 = vsel %vm194, %v182, %v197
    %v199 = vsel %vm193, %v196, %v198
    %v200 = vsel %vm192, %v179, %v182
    %v201 = vsel %vm195, %v188, 920167782
    %v202 = vsel %vm194, %v185, %v201
    %v203 = vsel %vm193, %v200, %v202
    %v204 = vsel %vm192, %v182, %v185
    %v205 = vsel %vm195, %v191, 1326507024
    %v206 = vsel %vm194, %v188, %v205
    %v207 = vsel %vm193, %v204, %v206
    %v208 = vshll.u32 %v168, 8
    %v209 = vmul.u32.u64.compose %v208, %v207
    %v210 = vextract.low.u32 %v209
    %v211 = vextract.high.u32 %v209
    %v212 = vmul.u32.u64.compose %v208, %v203
    %v213 = vextract.low.u32 %v212
    %v214 = vextract.high.u32 %v212
    %v215 = vmul.u32 %v208, %v199
    %v216 = vadd.s32 %v211, %v213
    %vm217 = vc.u32 %v211, %v213
    %v218 = vadd.s32 %v214, 1
    %v219 = vsel %vm217, %v218, %v214
    %v220 = vadd.s32 %v215, %v219
    %v221 = vadd.s32 %v220, 536870912
    %v222 = vshrl.u32 %v221, 30
    %v223 = vshll.u32 %v222, 30
    %v224 = vsub.s32 %v220, %v223
    %vm225 = vcmp.lt.s32.totalorder %v224, 0
    %v226 = vsub.s32 0, %v224
    %v227 = vsel %vm225, %v226, %v224
    %v228 = vclz %v227
    %v229 = vsub.s32 %v228, 2
    %vm230 = vcmp.gt.s32.totalorder 0, %v229
    %v231 = vsel %vm230, 0, %v229
    %v232 = vsub.s32 32, %v231
    %v233 = vshll.u32 %v224, %v231
    %v234 = vshrl.u32 %v216, %v232
    %v235 = vor.u32 %v233, %v234
    %v236 = vsub.s32 4294967266, %v231
    %v237 = vadd.s32 %v236, 127
    %v238 = vshll.u32 %v237, 23
    %v239 = vor.u32 4788187, %v238
    %v240 = vand.u32 2147483647, %v239
    %v242 = vcvt.s32.f32 %v235
    %v243 = vmul.f32 %v242, %v240
    %v244 = vxor.u32 %v243, 2147483648
    %v245 = vsel %vm162, %v244, %v243
    %v246 = vsub.s32 4, %v222
    %v247 = vsel %vm162, %v246, %v222
    %v248 = vsel %vm161, %v158, %v245
    %v249 = vsel %vm161, 0, %v247
    %v250 = vcosq.f32.pop %v248
    %v251 = vsinq.f32.pop %v248
    %vm252 = vweird.f32 %v158
    %v253 = vand.u32 %v249, 3
    %vm254 = vcmp.lt.s32.totalorder %v253, 2
    %vm255 = vcmp.eq.s32.totalorder %v253, 0
    %v256 = vxor.u32 %v251, 2147483648
    %v257 = vsel %vm255, %v250, %v256
    %vm258 = vcmp.eq.s32.totalorder %v253, 2
    %v259 = vxor.u32 %v250, 2147483648
    %v260 = vsel %vm258, %v259, %v251
    %v261 = vsel %vm254, %v257, %v260
    %v262 = vsel %vm252, nan, %v261
    %v263 = vand.u32 2147483647, %v159
    %vm264 = vcmp.le.f32.partialorder %v263, 0.7853982
    %vm265 = vcmp.lt.s32.totalorder %v159, 0
    %v266 = vand.u32 %v159, 2139095040
    %v267 = vshrl.u32 %v266, 23
    %v268 = vsub.s32 %v267, 127
    %v269 = vand.u32 2147483647, %v159
    %v270 = vand.u32 %v269, 8388607
    %v271 = vor.u32 %v270, 8388608
    %v272 = vsub.s32 0, %v271
    %v273 = vadd.s32 %v268, 1
    %vm274 = vcmp.gt.s32.totalorder %v273, 0
    %v275 = vsel %vm274, %v273, 0
    %v276 = vshrl.u32 %v275, 5
    %v277 = vand.u32 %v275, 31
    %v278 = vsub.s32 32, %v277
    %v279 = vshrl.u32 683565275, %v278
    %v280 = vshll.u32 683565275, %v277
    %v281 = vshrl.u32 2475754826, %v278
    %v282 = vor.u32 %v280, %v281
    %v283 = vshll.u32 2475754826, %v277
    %v284 = vshrl.u32 2131351028, %v278
    %v285 = vor.u32 %v283, %v284
    %v286 = vshll.u32 2131351028, %v277
    %v287 = vshrl.u32 2102212464, %v278
    %v288 = vor.u32 %v286, %v287
    %v289 = vshll.u32 2102212464, %v277
    %v290 = vshrl.u32 920167782, %v278
    %v291 = vor.u32 %v289, %v290
    %v292 = vshll.u32 920167782, %v277
    %v293 = vshrl.u32 1326507024, %v278
    %v294 = vor.u32 %v292, %v293
    %vm295 = vcmp.lt.s32.totalorder %v276, 1
    %vm296 = vcmp.lt.s32.totalorder %v276, 2
    %vm297 = vcmp.lt.s32.totalorder %v276, 3
    %vm298 = vcmp.lt.s32.totalorder %v276, 4
    %v299 = vsel %vm295, %v279, %v282
    %v300 = vsel %vm298, %v288, 2102212464
    %v301 = vsel %vm297, %v285, %v300
    %v302 = vsel %vm296, %v299, %v301
    %v303 = vsel %vm295, %v282, %v285
    %v304 = vsel %vm298, %v291, 920167782
    %v305 = vsel %vm297, %v288, %v304
    %v306 = vsel %vm296, %v303, %v305
    %v307 = vsel %vm295, %v285, %v288
    %v308 = vsel %vm298, %v294, 1326507024
    %v309 = vsel %vm297, %v291, %v308
    %v310 = vsel %vm296, %v307, %v309
    %v311 = vshll.u32 %v271, 8
    %v312 = vmul.u32.u64.compose %v311, %v310
    %v313 = vextract.low.u32 %v312
    %v314 = vextract.high.u32 %v312
    %v315 = vmul.u32.u64.compose %v311, %v306
    %v316 = vextract.low.u32 %v315
    %v317 = vextract.high.u32 %v315
    %v318 = vmul.u32 %v311, %v302
    %v319 = vadd.s32 %v314, %v316
    %vm320 = vc.u32 %v314, %v316
    %v321 = vadd.s32 %v317, 1
    %v322 = vsel %vm320, %v321, %v317
    %v323 = vadd.s32 %v318, %v322
    %v324 = vadd.s32 %v323, 536870912
    %v325 = vshrl.u32 %v324, 30
    %v326 = vshll.u32 %v325, 30
    %v327 = vsub.s32 %v323, %v326
    %vm328 = vcmp.lt.s32.totalorder %v327, 0
    %v329 = vsub.s32 0, %v327
    %v330 = vsel %vm328, %v329, %v327
    %v331 = vclz %v330
    %v332 = vsub.s32 %v331, 2
    %vm333 = vcmp.gt.s32.totalorder 0, %v332
    %v334 = vsel %vm333, 0, %v332
    %v335 = vsub.s32 32, %v334
    %v336 = vshll.u32 %v327, %v334
    %v337 = vshrl.u32 %v319, %v335
    %v338 = vor.u32 %v336, %v337
    %v339 = vsub.s32 4294967266, %v334
    %v340 = vadd.s32 %v339, 127
    %v341 = vshll.u32 %v340, 23
    %v342 = vor.u32 4788187, %v341
    %v343 = vand.u32 2147483647, %v342
    %v345 = vcvt.s32.f32 %v338
    %v346 = vmul.f32 %v345, %v343
    %v347 = vxor.u32 %v346, 2147483648
    %v348 = vsel %vm265, %v347, %v346
    %v349 = vsub.s32 4, %v325
    %v350 = vsel %vm265, %v349, %v325
    %v351 = vsel %vm264, %v159, %v348
    %v352 = vsel %vm264, 0, %v350
    %v353 = vcosq.f32.pop %v351
    %v354 = vsinq.f32.pop %v351
    %vm355 = vweird.f32 %v159
    %v356 = vand.u32 %v352, 3
    %vm357 = vcmp.lt.s32.totalorder %v356, 2
    %vm358 = vcmp.eq.s32.totalorder %v356, 0
    %v359 = vxor.u32 %v354, 2147483648
    %v360 = vsel %vm358, %v353, %v359
    %vm361 = vcmp.eq.s32.totalorder %v356, 2
    %v362 = vxor.u32 %v353, 2147483648
    %v363 = vsel %vm361, %v362, %v354
    %v364 = vsel %vm357, %v360, %v363
    %v365 = vsel %vm355, nan, %v364
    %v366 = vpack.c.bf16 %v365, %v262
    %v367 = vld [vmem:[#allocation2] sm:$0xf]
    %v368 = vld [vmem:[#allocation2 + $0x4] sm:$0xf]
    %v369 = vld [vmem:[#allocation2 + $0x8] sm:$0xf]
    %v370 = vld [vmem:[#allocation2 + $0xc] sm:$0xf]
    %v371 = vld [vmem:[#allocation2 + $0x10] sm:$0xf]
    %v372 = vld [vmem:[#allocation2 + $0x14] sm:$0xf]
    %v373 = vld [vmem:[#allocation2 + $0x18] sm:$0xf]
    %v374 = vld [vmem:[#allocation2 + $0x1c] sm:$0xf]
    %v375 = vld [vmem:[#allocation2 + $0x20] sm:$0xf]
    %v376 = vld [vmem:[#allocation2 + $0x24] sm:$0xf]
    %v377 = vld [vmem:[#allocation2 + $0x28] sm:$0xf]
    %v378 = vld [vmem:[#allocation2 + $0x2c] sm:$0xf]
    %v379 = vld [vmem:[#allocation2 + $0x30] sm:$0xf]
    %v380 = vld [vmem:[#allocation2 + $0x34] sm:$0xf]
    %v381 = vld [vmem:[#allocation2 + $0x38] sm:$0xf]
    %v382 = vld [vmem:[#allocation2 + $0x3c] sm:$0xf]
    %v383 = vld [vmem:[%s6] sm:$0x1]
    %v385 = vlaneseq
    %v386 = vshrl.u32 %v385, 7
    %v387 = vsub.s32 0, %v386
    %v388 = vrot.slane %v383, %v387
    %v406 = vunpack.c.l.b16 %v367
    %v407 = vunpack.c.l.b16 %v368
    %v408 = vunpack.c.l.b16 %v369
    %v409 = vunpack.c.l.b16 %v370
    %v410 = vunpack.c.l.b16 %v371
    %v411 = vunpack.c.l.b16 %v372
    %v412 = vunpack.c.l.b16 %v373
    %v413 = vunpack.c.l.b16 %v374
    %v414 = vunpack.c.l.b16 %v375
    %v415 = vunpack.c.l.b16 %v376
    %v416 = vunpack.c.l.b16 %v377
    %v417 = vunpack.c.l.b16 %v378
    %v418 = vunpack.c.l.b16 %v379
    %v419 = vunpack.c.l.b16 %v380
    %v420 = vunpack.c.l.b16 %v381
    %v421 = vunpack.c.l.b16 %v382
    %v422 = vpack.c.b16 %v407, %v406
    %v423 = vpack.c.b16 %v409, %v408
    %v424 = vpack.c.b16 %v411, %v410
    %v425 = vpack.c.b16 %v413, %v412
    %v426 = vpack.c.b16 %v415, %v414
    %v427 = vpack.c.b16 %v417, %v416
    %v428 = vpack.c.b16 %v419, %v418
    %v429 = vpack.c.b16 %v421, %v420
    %438 = vmatprep.subr.bf16.mxu0 0
    %439 = vmatpush1.bf16.msra.mxu0 %v422
    %440 = vmatprep.subr.bf16.mxu0 0
    %441 = vmatpush1.bf16.msra.mxu0 %v423
    %442 = vmatprep.subr.bf16.mxu0 0
    %443 = vmatpush1.bf16.msra.mxu0 %v424
    %444 = vmatprep.subr.bf16.mxu0 0
    %445 = vmatpush1.bf16.msra.mxu0 %v425
    %446 = vmatprep.subr.bf16.mxu0 0
    %447 = vmatpush1.bf16.msra.mxu0 %v426
    %448 = vmatprep.subr.bf16.mxu0 0
    %449 = vmatpush1.bf16.msra.mxu0 %v427
    %450 = vmatprep.subr.bf16.mxu0 0
    %451 = vmatpush1.bf16.msra.mxu0 %v428
    %452 = vmatprep.subr.bf16.mxu0 0
    %453 = vmatpush1.bf16.msra.mxu0 %v429
    %454 = vmatprep.subr.bf16.mxu0 0
    %455 = vmatpush1.bf16.msra.mxu0 0
    %456 = vmatprep.subr.bf16.mxu0 0
    %457 = vmatpush1.bf16.msra.mxu0 0
    %458 = vmatprep.subr.bf16.mxu0 0
    %459 = vmatpush1.bf16.msra.mxu0 0
    %460 = vmatprep.subr.bf16.mxu0 0
    %461 = vmatpush1.bf16.msra.mxu0 0
    %462 = vmatprep.subr.bf16.mxu0 0
    %463 = vmatpush1.bf16.msra.mxu0 0
    %464 = vmatprep.subr.bf16.mxu0 0
    %465 = vmatpush1.bf16.msra.mxu0 0
    %466 = vmatprep.subr.bf16.mxu0 0
    %467 = vmatpush1.bf16.msra.mxu0 0
    %468 = vmatprep.subr.bf16.mxu0 0
    %469 = vmatpush1.bf16.msra.mxu0 0
    %470 = vmatprep.mubr.bf16.mxu0 0
    %471 = vmatmul.mubr.bf16.gmra.mrb[0].mxu0 %v366
    %v472 = vpop.f32.mrb[0].mxu0
    %v473 = vadd.f32 %v388, %v472
    %v474 = vpop.f32.mrb[0].mxu0
    %v475 = vpop.f32.mrb[0].mxu0
    %v476 = vadd.f32 %v388, %v475
    %v477 = vpop.f32.mrb[0].mxu0
    %478 = vdwg.mxu0
    %v479 = vmax.f32 %v473, 0.0
    %v480 = vmax.f32 %v476, 0.0
    %v483 = vunpack.c.l.s4 1966171168
    %v484 = vunpack.c.0.s8 %v483
    %v485 = vlaneseq
    %v486 = vshrl.u32 %v485, 7
    %v487 = vsub.s32 %v484, %v486
    %v488 = vrot.slane %v138, %v487
    %v489 = vcombine.high %v488, %v488
    %v491 = vunpack.c.l.s4 1966171168
    %v492 = vunpack.c.0.s8 %v491
    %v493 = vlaneseq
    %v494 = vshrl.u32 %v493, 7
    %v495 = vsub.s32 %v492, %v494
    %v496 = vrot.slane %v488, %v495
    %v498 = vunpack.c.l.s4 1966171168
    %v499 = vunpack.c.0.s8 %v498
    %v500 = vlaneseq
    %v501 = vshrl.u32 %v500, 7
    %v502 = vsub.s32 %v499, %v501
    %v503 = vrot.slane %v489, %v502
    %v504 = vlaneseq
    %v505 = vshrl.u32 %v504, 7
    %v506 = vsub.s32 0, %v505
    %v507 = vrot.slane %v496, %v506
    %v508 = vlaneseq
    %v509 = vshrl.u32 %v508, 7
    %v510 = vsub.s32 0, %v509
    %v511 = vrot.slane %v503, %v510
    %v514 = vmul.f32 %v507, %v479
    %v515 = vmul.f32 %v511, %v480
    %v516 = vpack.c.bf16 %v515, %v514
    %v517 = vld [vmem:[#allocation4] sm:$0xf]
    %v518 = vld [vmem:[#allocation4 + $0x4] sm:$0xf]
    %v519 = vld [vmem:[#allocation4 + $0x8] sm:$0xf]
    %v520 = vld [vmem:[#allocation4 + $0xc] sm:$0xf]
    %v521 = vld [vmem:[#allocation4 + $0x10] sm:$0xf]
    %v522 = vld [vmem:[#allocation4 + $0x14] sm:$0xf]
    %v523 = vld [vmem:[#allocation4 + $0x18] sm:$0xf]
    %v524 = vld [vmem:[#allocation4 + $0x1c] sm:$0xf]
    %v525 = vld [vmem:[#allocation4 + $0x20] sm:$0xf]
    %v526 = vld [vmem:[#allocation4 + $0x24] sm:$0xf]
    %v527 = vld [vmem:[#allocation4 + $0x28] sm:$0xf]
    %v528 = vld [vmem:[#allocation4 + $0x2c] sm:$0xf]
    %v529 = vld [vmem:[#allocation4 + $0x30] sm:$0xf]
    %v530 = vld [vmem:[#allocation4 + $0x34] sm:$0xf]
    %v531 = vld [vmem:[#allocation4 + $0x38] sm:$0xf]
    %v532 = vld [vmem:[#allocation4 + $0x3c] sm:$0xf]
    %v533 = vld [vmem:[%s8] sm:$0x1]
    %v535 = vlaneseq
    %v536 = vshrl.u32 %v535, 7
    %v537 = vsub.s32 0, %v536
    %v538 = vrot.slane %v533, %v537
    %v556 = vunpack.c.l.b16 %v517
    %v557 = vunpack.c.l.b16 %v518
    %v558 = vunpack.c.l.b16 %v519
    %v559 = vunpack.c.l.b16 %v520
    %v560 = vunpack.c.l.b16 %v521
    %v561 = vunpack.c.l.b16 %v522
    %v562 = vunpack.c.l.b16 %v523
    %v563 = vunpack.c.l.b16 %v524
    %v564 = vunpack.c.l.b16 %v525
    %v565 = vunpack.c.l.b16 %v526
    %v566 = vunpack.c.l.b16 %v527
    %v567 = vunpack.c.l.b16 %v528
    %v568 = vunpack.c.l.b16 %v529
    %v569 = vunpack.c.l.b16 %v530
    %v570 = vunpack.c.l.b16 %v531
    %v571 = vunpack.c.l.b16 %v532
    %v572 = vpack.c.b16 %v557, %v556
    %v573 = vpack.c.b16 %v559, %v558
    %v574 = vpack.c.b16 %v561, %v560
    %v575 = vpack.c.b16 %v563, %v562
    %v576 = vpack.c.b16 %v565, %v564
    %v577 = vpack.c.b16 %v567, %v566
    %v578 = vpack.c.b16 %v569, %v568
    %v579 = vpack.c.b16 %v571, %v570
    %588 = vmatprep.subr.bf16.mxu0 0
    %589 = vmatpush1.bf16.msra.mxu0 %v572
    %590 = vmatprep.subr.bf16.mxu0 0
    %591 = vmatpush1.bf16.msra.mxu0 %v573
    %592 = vmatprep.subr.bf16.mxu0 0
    %593 = vmatpush1.bf16.msra.mxu0 %v574
    %594 = vmatprep.subr.bf16.mxu0 0
    %595 = vmatpush1.bf16.msra.mxu0 %v575
    %596 = vmatprep.subr.bf16.mxu0 0
    %597 = vmatpush1.bf16.msra.mxu0 %v576
    %598 = vmatprep.subr.bf16.mxu0 0
    %599 = vmatpush1.bf16.msra.mxu0 %v577
    %600 = vmatprep.subr.bf16.mxu0 0
    %601 = vmatpush1.bf16.msra.mxu0 %v578
    %602 = vmatprep.subr.bf16.mxu0 0
    %603 = vmatpush1.bf16.msra.mxu0 %v579
    %604 = vmatprep.subr.bf16.mxu0 0
    %605 = vmatpush1.bf16.msra.mxu0 0
    %606 = vmatprep.subr.bf16.mxu0 0
    %607 = vmatpush1.bf16.msra.mxu0 0
    %608 = vmatprep.subr.bf16.mxu0 0
    %609 = vmatpush1.bf16.msra.mxu0 0
    %610 = vmatprep.subr.bf16.mxu0 0
    %611 = vmatpush1.bf16.msra.mxu0 0
    %612 = vmatprep.subr.bf16.mxu0 0
    %613 = vmatpush1.bf16.msra.mxu0 0
    %614 = vmatprep.subr.bf16.mxu0 0
    %615 = vmatpush1.bf16.msra.mxu0 0
    %616 = vmatprep.subr.bf16.mxu0 0
    %617 = vmatpush1.bf16.msra.mxu0 0
    %618 = vmatprep.subr.bf16.mxu0 0
    %619 = vmatpush1.bf16.msra.mxu0 0
    %620 = vmatprep.mubr.bf16.mxu0 0
    %621 = vmatmul.mubr.bf16.gmra.mrb[0].mxu0 %v516
    %v622 = vpop.f32.mrb[0].mxu0
    %v623 = vadd.f32 %v538, %v622
    %v624 = vpop.f32.mrb[0].mxu0
    %v625 = vpop.f32.mrb[0].mxu0
    %v626 = vadd.f32 %v538, %v625
    %v627 = vpop.f32.mrb[0].mxu0
    %628 = vdwg.mxu0
    %v629 = vmax.f32 %v623, 0.0
    %v630 = vmax.f32 %v626, 0.0
    %v631 = vpack.c.bf16 %v630, %v629
    %v632 = vld [vmem:[#allocation6] sm:$0xf]
    %v633 = vld [vmem:[#allocation6 + $0x4] sm:$0xf]
    %v634 = vld [vmem:[#allocation6 + $0x8] sm:$0xf]
    %v635 = vld [vmem:[#allocation6 + $0xc] sm:$0xf]
    %v636 = vld [vmem:[#allocation6 + $0x10] sm:$0xf]
    %v637 = vld [vmem:[#allocation6 + $0x14] sm:$0xf]
    %v638 = vld [vmem:[#allocation6 + $0x18] sm:$0xf]
    %v639 = vld [vmem:[#allocation6 + $0x1c] sm:$0xf]
    %v640 = vld [vmem:[#allocation6 + $0x20] sm:$0xf]
    %v641 = vld [vmem:[#allocation6 + $0x24] sm:$0xf]
    %v642 = vld [vmem:[#allocation6 + $0x28] sm:$0xf]
    %v643 = vld [vmem:[#allocation6 + $0x2c] sm:$0xf]
    %v644 = vld [vmem:[#allocation6 + $0x30] sm:$0xf]
    %v645 = vld [vmem:[#allocation6 + $0x34] sm:$0xf]
    %v646 = vld [vmem:[#allocation6 + $0x38] sm:$0xf]
    %v647 = vld [vmem:[#allocation6 + $0x3c] sm:$0xf]
    %v648 = vld [vmem:[%s10] sm:$0x1]
    %v650 = vlaneseq
    %v651 = vshrl.u32 %v650, 7
    %v652 = vsub.s32 0, %v651
    %v653 = vrot.slane %v648, %v652
    %v671 = vunpack.c.l.b16 %v632
    %v672 = vunpack.c.l.b16 %v633
    %v673 = vunpack.c.l.b16 %v634
    %v674 = vunpack.c.l.b16 %v635
    %v675 = vunpack.c.l.b16 %v636
    %v676 = vunpack.c.l.b16 %v637
    %v677 = vunpack.c.l.b16 %v638
    %v678 = vunpack.c.l.b16 %v639
    %v679 = vunpack.c.l.b16 %v640
    %v680 = vunpack.c.l.b16 %v641
    %v681 = vunpack.c.l.b16 %v642
    %v682 = vunpack.c.l.b16 %v643
    %v683 = vunpack.c.l.b16 %v644
    %v684 = vunpack.c.l.b16 %v645
    %v685 = vunpack.c.l.b16 %v646
    %v686 = vunpack.c.l.b16 %v647
    %v687 = vpack.c.b16 %v672, %v671
    %v688 = vpack.c.b16 %v674, %v673
    %v689 = vpack.c.b16 %v676, %v675
    %v690 = vpack.c.b16 %v678, %v677
    %v691 = vpack.c.b16 %v680, %v679
    %v692 = vpack.c.b16 %v682, %v681
    %v693 = vpack.c.b16 %v684, %v683
    %v694 = vpack.c.b16 %v686, %v685
    %703 = vmatprep.subr.bf16.mxu0 0
    %704 = vmatpush1.bf16.msra.mxu0 %v687
    %705 = vmatprep.subr.bf16.mxu0 0
    %706 = vmatpush1.bf16.msra.mxu0 %v688
    %707 = vmatprep.subr.bf16.mxu0 0
    %708 = vmatpush1.bf16.msra.mxu0 %v689
    %709 = vmatprep.subr.bf16.mxu0 0
    %710 = vmatpush1.bf16.msra.mxu0 %v690
    %711 = vmatprep.subr.bf16.mxu0 0
    %712 = vmatpush1.bf16.msra.mxu0 %v691
    %713 = vmatprep.subr.bf16.mxu0 0
    %714 = vmatpush1.bf16.msra.mxu0 %v692
    %715 = vmatprep.subr.bf16.mxu0 0
    %716 = vmatpush1.bf16.msra.mxu0 %v693
    %717 = vmatprep.subr.bf16.mxu0 0
    %718 = vmatpush1.bf16.msra.mxu0 %v694
    %719 = vmatprep.subr.bf16.mxu0 0
    %720 = vmatpush1.bf16.msra.mxu0 0
    %721 = vmatprep.subr.bf16.mxu0 0
    %722 = vmatpush1.bf16.msra.mxu0 0
    %723 = vmatprep.subr.bf16.mxu0 0
    %724 = vmatpush1.bf16.msra.mxu0 0
    %725 = vmatprep.subr.bf16.mxu0 0
    %726 = vmatpush1.bf16.msra.mxu0 0
    %727 = vmatprep.subr.bf16.mxu0 0
    %728 = vmatpush1.bf16.msra.mxu0 0
    %729 = vmatprep.subr.bf16.mxu0 0
    %730 = vmatpush1.bf16.msra.mxu0 0
    %731 = vmatprep.subr.bf16.mxu0 0
    %732 = vmatpush1.bf16.msra.mxu0 0
    %733 = vmatprep.subr.bf16.mxu0 0
    %734 = vmatpush1.bf16.msra.mxu0 0
    %735 = vmatprep.mubr.bf16.mxu0 0
    %736 = vmatmul.mubr.bf16.gmra.mrb[0].mxu0 %v631
    %v737 = vpop.f32.mrb[0].mxu0
    %v738 = vadd.f32 %v653, %v737
    %v739 = vpop.f32.mrb[0].mxu0
    %v740 = vpop.f32.mrb[0].mxu0
    %v741 = vadd.f32 %v653, %v740
    %v742 = vpop.f32.mrb[0].mxu0
    %743 = vdwg.mxu0
    %vm744 = vcmask 31744
    %745 = vst.msk [vmem:[%s11] sm:$0xff] %vm744, %v738
    %746 = vst.msk [vmem:[%s11 + $0x8] sm:$0xff] %vm744, %v741
    // Predicated region
    $region58: #{tpu_custom_call.1} parent=1 // pred_check
      _
    $region59: #{tpu_custom_call.1} parent=1 // pred_check_branch
      %748 = sbr.rel (0) target = $region61
    $region60: #{tpu_custom_call.1} parent=1 // pred_region
      _
    $region61: #{tpu_custom_call.1} parent=1 // pred_fallthru
      _
    // Predicated region
    $region62: #{tpu_custom_call.1} parent=1 // pred_check
      _
    $region63: #{tpu_custom_call.1} parent=1 // pred_check_branch
      %750 = sbr.rel (0) target = $region65
    $region64: #{tpu_custom_call.1} parent=1 // pred_region
      _
    $region65: #{tpu_custom_call.1} parent=1 // pred_fallthru
      _
    %751 = vsyncpa [#allocation3], 1
    %752 = vsyncpa [#allocation5], 1

// kernel: tpu_custom_call.1
$region0: #{tpu_custom_call.1}
  #allocation0 [shape = 'u32[]', space=smem, size = 0x4, offset = 0x4, fixed_abs, tag = 'smem constant byte address 0x4 - core index']
  #allocation1 [shape = 'u32[144,128]{1,0:T(1,128)}', space=vmem, size = 0x12000, scoped, tag = 'internal scratch']
  %s0 = inlined_call_operand.vmem [shape: f32[2,8], index: 0, kind: input, shape index: {}]
  %s1 = inlined_call_operand.vmem [shape: f32[16,1], index: 1, kind: input, shape index: {}]
  %s2 = inlined_call_operand.vmem [shape: f32[1,128], index: 2, kind: input, shape index: {}]
  %s3 = inlined_call_operand.vmem [shape: bf16[8,128], index: 3, kind: input, shape index: {}]
  %s4 = inlined_call_operand.vmem [shape: f32[1,128], index: 4, kind: input, shape index: {}]
  %s5 = inlined_call_operand.hbm [shape: bf16[128,128], index: 5, kind: input, shape index: {}]
  %s6 = inlined_call_operand.vmem [shape: f32[1,128], index: 6, kind: input, shape index: {}]
  %s7 = inlined_call_operand.hbm [shape: bf16[128,128], index: 7, kind: input, shape index: {}]
  %s8 = inlined_call_operand.vmem [shape: f32[1,128], index: 8, kind: input, shape index: {}]
  %s9 = inlined_call_operand.hbm [shape: bf16[128,128], index: 9, kind: input, shape index: {}]
  %s10 = inlined_call_operand.vmem [shape: f32[1,128], index: 10, kind: input, shape index: {}]
  %s11 = inlined_call_operand.vmem [shape: f32[16,4], index: 11, kind: output, shape index: {}]
  %s12 = sld [smem:[#allocation0]]
  $region66: #{tpu_custom_call.1} parent=0
    _
  %s14 = ssub.s32 1, %s12
  %s15 = scalar_select 0, %s14, %s12
  $region1: #{tpu_custom_call.1} parent=0
    #allocation2 [shape = 'u8[32768]{0}', space=vmem, size = 0x8000, scoped, tag = 'input window, operand 5, single buffered']
    #allocation3 [shape = 's32[1]{0}', space=sflag, size = 0x4, scoped, tag = 'scoped memory for tpu_custom_call.1']
    #allocation4 [shape = 'u8[32768]{0}', space=vmem, size = 0x8000, scoped, tag = 'input window, operand 7, single buffered']
    #allocation5 [shape = 's32[1]{0}', space=sflag, size = 0x4, scoped, tag = 'scoped memory for tpu_custom_call.1']
    #allocation6 [shape = 'u8[32768]{0}', space=vmem, size = 0x8000, scoped, tag = 'input window, operand 9, single buffered']
    %16 = vsyncpa [#allocation3], 0
    %17 = vsyncpa [#allocation5], 0
    // Predicated region
    $region2: #{tpu_custom_call.1} parent=1 // pred_check
      _
    $region3: #{tpu_custom_call.1} parent=1 // pred_check_branch
      %19 = sbr.rel (0) target = $region5
    $region4: #{tpu_custom_call.1} parent=1 // pred_region
      _
    $region5: #{tpu_custom_call.1} parent=1 // pred_fallthru
      _
    // Predicated region
    $region6: #{tpu_custom_call.1} parent=1 // pred_check
      _
    $region7: #{tpu_custom_call.1} parent=1 // pred_check_branch
      %21 = sbr.rel (0) target = $region9
    $region8: #{tpu_custom_call.1} parent=1 // pred_region
      _
    $region9: #{tpu_custom_call.1} parent=1 // pred_fallthru
      _
    // Predicated region
    $region10: #{tpu_custom_call.1} parent=1 // pred_check
      _
    $region11: #{tpu_custom_call.1} parent=1 // pred_check_branch
      %23 = sbr.rel (0) target = $region13
    $region12: #{tpu_custom_call.1} parent=1 // pred_region
      _
    $region13: #{tpu_custom_call.1} parent=1 // pred_fallthru
      _
    // Predicated region
    $region14: #{tpu_custom_call.1} parent=1 // pred_check
      _
    $region15: #{tpu_custom_call.1} parent=1 // pred_check_branch
      %25 = sbr.rel (0) target = $region17
    $region16: #{tpu_custom_call.1} parent=1 // pred_region
      _
    $region17: #{tpu_custom_call.1} parent=1 // pred_fallthru
      _
    // Predicated region
    $region18: #{tpu_custom_call.1} parent=1 // pred_check
      _
    $region19: #{tpu_custom_call.1} parent=1 // pred_check_branch
      %27 = sbr.rel (0) target = $region21
    $region20: #{tpu_custom_call.1} parent=1 // pred_region
      _
    $region21: #{tpu_custom_call.1} parent=1 // pred_fallthru
      _
    // Predicated region
    $region22: #{tpu_custom_call.1} parent=1 // pred_check
      _
    $region23: #{tpu_custom_call.1} parent=1 // pred_check_branch
      %29 = sbr.rel (0) target = $region25
    $region24: #{tpu_custom_call.1} parent=1 // pred_region
      %s31 = ssub.s32 1024, 1024
      %32 = vsyncadd [#allocation3], %s31
      %s33 = sshll.u32 [#allocation2], 4
      %s34 = int_to_ptr.vmem [resolvable:$true] %s33
      %39 = dma.hbm_to_vmem [thread:$0]  %s5, 1024, %s34, [#allocation3], 64, 64, 4
    $region25: #{tpu_custom_call.1} parent=1 // pred_fallthru
      _
    // Predicated region
    $region26: #{tpu_custom_call.1} parent=1 // pred_check
      _
    $region27: #{tpu_custom_call.1} parent=1 // pred_check_branch
      %41 = sbr.rel (0) target = $region29
    $region28: #{tpu_custom_call.1} parent=1 // pred_region
      _
    $region29: #{tpu_custom_call.1} parent=1 // pred_fallthru
      _
    // Predicated region
    $region30: #{tpu_custom_call.1} parent=1 // pred_check
      _
    $region31: #{tpu_custom_call.1} parent=1 // pred_check_branch
      %43 = sbr.rel (0) target = $region33
    $region32: #{tpu_custom_call.1} parent=1 // pred_region
      %s45 = ssub.s32 1024, 1024
      %46 = vsyncadd [#allocation5], %s45
      %s47 = sshll.u32 [#allocation4], 4
      %s48 = int_to_ptr.vmem [resolvable:$true] %s47
      %53 = dma.hbm_to_vmem [thread:$0]  %s7, 1024, %s48, [#allocation5], 64, 64, 4
    $region33: #{tpu_custom_call.1} parent=1 // pred_fallthru
      _
    // Predicated region
    $region34: #{tpu_custom_call.1} parent=1 // pred_check
      _
    $region35: #{tpu_custom_call.1} parent=1 // pred_check_branch
      %55 = sbr.rel (0) target = $region37
    $region36: #{tpu_custom_call.1} parent=1 // pred_region
      _
    $region37: #{tpu_custom_call.1} parent=1 // pred_fallthru
      _
    // Predicated region
    $region38: #{tpu_custom_call.1} parent=1 // pred_check
      _
    $region39: #{tpu_custom_call.1} parent=1 // pred_check_branch
      %57 = sbr.rel (0) target = $region41
    $region40: #{tpu_custom_call.1} parent=1 // pred_region
      %s59 = ssub.s32 1024, 1024
      %60 = vsyncadd [#allocation5], %s59
      %s61 = sshll.u32 [#allocation6], 4
      %s62 = int_to_ptr.vmem [resolvable:$true] %s61
      %67 = dma.hbm_to_vmem [thread:$0]  %s9, 1024, %s62, [#allocation5], 64, 64, 4
    $region41: #{tpu_custom_call.1} parent=1 // pred_fallthru
      _
    // Predicated region
    $region42: #{tpu_custom_call.1} parent=1 // pred_check
      _
    $region43: #{tpu_custom_call.1} parent=1 // pred_check_branch
      %69 = sbr.rel (0) target = $region45
    $region44: #{tpu_custom_call.1} parent=1 // pred_region
      _
    $region45: #{tpu_custom_call.1} parent=1 // pred_fallthru
      _
    // Predicated region
    $region46: #{tpu_custom_call.1} parent=1 // pred_check
      _
    $region47: #{tpu_custom_call.1} parent=1 // pred_check_branch
      %71 = sbr.rel (0) target = $region49
    $region48: #{tpu_custom_call.1} parent=1 // pred_region
      %72 = dma.done [#allocation3], 1024
    $region49: #{tpu_custom_call.1} parent=1 // pred_fallthru
      _
    // Predicated region
    $region50: #{tpu_custom_call.1} parent=1 // pred_check
      _
    $region51: #{tpu_custom_call.1} parent=1 // pred_check_branch
      %74 = sbr.rel (0) target = $region53
    $region52: #{tpu_custom_call.1} parent=1 // pred_region
      %75 = dma.done [#allocation5], 1024
    $region53: #{tpu_custom_call.1} parent=1 // pred_fallthru
      _
    // Predicated region
    $region54: #{tpu_custom_call.1} parent=1 // pred_check
      _
    $region55: #{tpu_custom_call.1} parent=1 // pred_check_branch
      %77 = sbr.rel (0) target = $region57
    $region56: #{tpu_custom_call.1} parent=1 // pred_region
      %78 = dma.done [#allocation5], 1024
    $region57: #{tpu_custom_call.1} parent=1 // pred_fallthru
      _
    %v80 = vld [vmem:[%s0] sm:$0x3]
    %v81 = vpack.c.bf16 %v80, %v80
    %v82 = vld [vmem:[%s3] sm:$0xf]
    %v83 = vld [vmem:[%s4] sm:$0x1]
    %v85 = vlaneseq
    %v86 = vshrl.u32 %v85, 7
    %v87 = vsub.s32 0, %v86
    %v88 = vrot.slane %v83, %v87
    %vm90 = vcmask 64512
    %v92 = vsel %vm90, %v81, 0
    %vm94 = vcmask 1043456
    %v96 = vsel %vm94, %v82, 0
    %98 = vmatprep.subr.bf16.mxu0 0
    %99 = vmatpush1.bf16.msra.mxu0 %v96
    %100 = vmatprep.subr.bf16.mxu0 0
    %101 = vmatpush1.bf16.msra.mxu0 0
    %102 = vmatprep.subr.bf16.mxu0 0
    %103 = vmatpush1.bf16.msra.mxu0 0
    %104 = vmatprep.subr.bf16.mxu0 0
    %105 = vmatpush1.bf16.msra.mxu0 0
    %106 = vmatprep.subr.bf16.mxu0 0
    %107 = vmatpush1.bf16.msra.mxu0 0
    %108 = vmatprep.subr.bf16.mxu0 0
    %109 = vmatpush1.bf16.msra.mxu0 0
    %110 = vmatprep.subr.bf16.mxu0 0
    %111 = vmatpush1.bf16.msra.mxu0 0
    %112 = vmatprep.subr.bf16.mxu0 0
    %113 = vmatpush1.bf16.msra.mxu0 0
    %114 = vmatprep.subr.bf16.mxu0 0
    %115 = vmatpush1.bf16.msra.mxu0 0
    %116 = vmatprep.subr.bf16.mxu0 0
    %117 = vmatpush1.bf16.msra.mxu0 0
    %118 = vmatprep.subr.bf16.mxu0 0
    %119 = vmatpush1.bf16.msra.mxu0 0
    %120 = vmatprep.subr.bf16.mxu0 0
    %121 = vmatpush1.bf16.msra.mxu0 0
    %122 = vmatprep.subr.bf16.mxu0 0
    %123 = vmatpush1.bf16.msra.mxu0 0
    %124 = vmatprep.subr.bf16.mxu0 0
    %125 = vmatpush1.bf16.msra.mxu0 0
    %126 = vmatprep.subr.bf16.mxu0 0
    %127 = vmatpush1.bf16.msra.mxu0 0
    %128 = vmatprep.subr.bf16.mxu0 0
    %129 = vmatpush1.bf16.msra.mxu0 0
    %130 = vmatprep.mubr.bf16.mxu0 0
    %131 = vmatmul.mubr.bf16.gmra.mrb[0].mxu0 %v92
    %v132 = vpop.f32.mrb[0].mxu0
    %v133 = vadd.f32 %v88, %v132
    %v134 = vpop.f32.mrb[0].mxu0
    %v135 = vpop.f32.mrb[0].mxu0
    %v136 = vpop.f32.mrb[0].mxu0
    %137 = vdwg.mxu0
    %v138 = vmax.f32 %v133, 0.0
    %v139 = vld [vmem:[%s1] sm:$0xff]
    %v140 = vld [vmem:[%s1 + $0x8] sm:$0xff]
    %v141 = vld [vmem:[%s2] sm:$0x1]
    %143 = vset.pattern.permute.xlu0 0
    %144 = vperm.xlu0 %143, %v139
    %v145 = vpop.permute.xlu0 %144
    %148 = vset.pattern.permute.xlu0 0
    %149 = vperm.xlu0 %148, %v140
    %v150 = vpop.permute.xlu0 %149
    %v153 = vlaneseq
    %v154 = vshrl.u32 %v153, 7
    %v155 = vsub.s32 0, %v154
    %v156 = vrot.slane %v141, %v155
    %v158 = vmul.f32 %v145, %v156
    %v159 = vmul.f32 %v150, %v156
    %v160 = vand.u32 2147483647, %v158
    %vm161 = vcmp.le.f32.partialorder %v160, 0.7853982
    %vm162 = vcmp.lt.s32.totalorder %v158, 0
    %v163 = vand.u32 %v158, 2139095040
    %v164 = vshrl.u32 %v163, 23
    %v165 = vsub.s32 %v164, 127
    %v166 = vand.u32 2147483647, %v158
    %v167 = vand.u32 %v166, 8388607
    %v168 = vor.u32 %v167, 8388608
    %v169 = vsub.s32 0, %v168
    %v170 = vadd.s32 %v165, 1
    %vm171 = vcmp.gt.s32.totalorder %v170, 0
    %v172 = vsel %vm171, %v170, 0
    %v173 = vshrl.u32 %v172, 5
    %v174 = vand.u32 %v172, 31
    %v175 = vsub.s32 32, %v174
    %v176 = vshrl.u32 683565275, %v175
    %v177 = vshll.u32 683565275, %v174
    %v178 = vshrl.u32 2475754826, %v175
    %v179 = vor.u32 %v177, %v178
    %v180 = vshll.u32 2475754826, %v174
    %v181 = vshrl.u32 2131351028, %v175
    %v182 = vor.u32 %v180, %v181
    %v183 = vshll.u32 2131351028, %v174
    %v184 = vshrl.u32 2102212464, %v175
    %v185 = vor.u32 %v183, %v184
    %v186 = vshll.u32 2102212464, %v174
    %v187 = vshrl.u32 920167782, %v175
    %v188 = vor.u32 %v186, %v187
    %v189 = vshll.u32 920167782, %v174
    %v190 = vshrl.u32 1326507024, %v175
    %v191 = vor.u32 %v189, %v190
    %vm192 = vcmp.lt.s32.totalorder %v173, 1
    %vm193 = vcmp.lt.s32.totalorder %v173, 2
    %vm194 = vcmp.lt.s32.totalorder %v173, 3
    %vm195 = vcmp.lt.s32.totalorder %v173, 4
    %v196 = vsel %vm192, %v176, %v179
    %v197 = vsel %vm195, %v185, 2102212464
    %v198 = vsel %vm194, %v182, %v197
    %v199 = vsel %vm193, %v196, %v198
    %v200 = vsel %vm192, %v179, %v182
    %v201 = vsel %vm195, %v188, 920167782
    %v202 = vsel %vm194, %v185, %v201
    %v203 = vsel %vm193, %v200, %v202
    %v204 = vsel %vm192, %v182, %v185
    %v205 = vsel %vm195, %v191, 1326507024
    %v206 = vsel %vm194, %v188, %v205
    %v207 = vsel %vm193, %v204, %v206
    %v208 = vshll.u32 %v168, 8
    %v209 = vmul.u32.u64.compose %v208, %v207
    %v210 = vextract.low.u32 %v209
    %v211 = vextract.high.u32 %v209
    %v212 = vmul.u32.u64.compose %v208, %v203
    %v213 = vextract.low.u32 %v212
    %v214 = vextract.high.u32 %v212
    %v215 = vmul.u32 %v208, %v199
    %v216 = vadd.s32 %v211, %v213
    %vm217 = vc.u32 %v211, %v213
    %v218 = vadd.s32 %v214, 1
    %v219 = vsel %vm217, %v218, %v214
    %v220 = vadd.s32 %v215, %v219
    %v221 = vadd.s32 %v220, 536870912
    %v222 = vshrl.u32 %v221, 30
    %v223 = vshll.u32 %v222, 30
    %v224 = vsub.s32 %v220, %v223
    %vm225 = vcmp.lt.s32.totalorder %v224, 0
    %v226 = vsub.s32 0, %v224
    %v227 = vsel %vm225, %v226, %v224
    %v228 = vclz %v227
    %v229 = vsub.s32 %v228, 2
    %vm230 = vcmp.gt.s32.totalorder 0, %v229
    %v231 = vsel %vm230, 0, %v229
    %v232 = vsub.s32 32, %v231
    %v233 = vshll.u32 %v224, %v231
    %v234 = vshrl.u32 %v216, %v232
    %v235 = vor.u32 %v233, %v234
    %v236 = vsub.s32 4294967266, %v231
    %v237 = vadd.s32 %v236, 127
    %v238 = vshll.u32 %v237, 23
    %v239 = vor.u32 4788187, %v238
    %v240 = vand.u32 2147483647, %v239
    %v242 = vcvt.s32.f32 %v235
    %v243 = vmul.f32 %v242, %v240
    %v244 = vxor.u32 %v243, 2147483648
    %v245 = vsel %vm162, %v244, %v243
    %v246 = vsub.s32 4, %v222
    %v247 = vsel %vm162, %v246, %v222
    %v248 = vsel %vm161, %v158, %v245
    %v249 = vsel %vm161, 0, %v247
    %v250 = vcosq.f32.pop %v248
    %v251 = vsinq.f32.pop %v248
    %vm252 = vweird.f32 %v158
    %v253 = vand.u32 %v249, 3
    %vm254 = vcmp.lt.s32.totalorder %v253, 2
    %vm255 = vcmp.eq.s32.totalorder %v253, 0
    %v256 = vxor.u32 %v251, 2147483648
    %v257 = vsel %vm255, %v250, %v256
    %vm258 = vcmp.eq.s32.totalorder %v253, 2
    %v259 = vxor.u32 %v250, 2147483648
    %v260 = vsel %vm258, %v259, %v251
    %v261 = vsel %vm254, %v257, %v260
    %v262 = vsel %vm252, nan, %v261
    %v263 = vand.u32 2147483647, %v159
    %vm264 = vcmp.le.f32.partialorder %v263, 0.7853982
    %vm265 = vcmp.lt.s32.totalorder %v159, 0
    %v266 = vand.u32 %v159, 2139095040
    %v267 = vshrl.u32 %v266, 23
    %v268 = vsub.s32 %v267, 127
    %v269 = vand.u32 2147483647, %v159
    %v270 = vand.u32 %v269, 8388607
    %v271 = vor.u32 %v270, 8388608
    %v272 = vsub.s32 0, %v271
    %v273 = vadd.s32 %v268, 1
    %vm274 = vcmp.gt.s32.totalorder %v273, 0
    %v275 = vsel %vm274, %v273, 0
    %v276 = vshrl.u32 %v275, 5
    %v277 = vand.u32 %v275, 31
    %v278 = vsub.s32 32, %v277
    %v279 = vshrl.u32 683565275, %v278
    %v280 = vshll.u32 683565275, %v277
    %v281 = vshrl.u32 2475754826, %v278
    %v282 = vor.u32 %v280, %v281
    %v283 = vshll.u32 2475754826, %v277
    %v284 = vshrl.u32 2131351028, %v278
    %v285 = vor.u32 %v283, %v284
    %v286 = vshll.u32 2131351028, %v277
    %v287 = vshrl.u32 2102212464, %v278
    %v288 = vor.u32 %v286, %v287
    %v289 = vshll.u32 2102212464, %v277
    %v290 = vshrl.u32 920167782, %v278
    %v291 = vor.u32 %v289, %v290
    %v292 = vshll.u32 920167782, %v277
    %v293 = vshrl.u32 1326507024, %v278
    %v294 = vor.u32 %v292, %v293
    %vm295 = vcmp.lt.s32.totalorder %v276, 1
    %vm296 = vcmp.lt.s32.totalorder %v276, 2
    %vm297 = vcmp.lt.s32.totalorder %v276, 3
    %vm298 = vcmp.lt.s32.totalorder %v276, 4
    %v299 = vsel %vm295, %v279, %v282
    %v300 = vsel %vm298, %v288, 2102212464
    %v301 = vsel %vm297, %v285, %v300
    %v302 = vsel %vm296, %v299, %v301
    %v303 = vsel %vm295, %v282, %v285
    %v304 = vsel %vm298, %v291, 920167782
    %v305 = vsel %vm297, %v288, %v304
    %v306 = vsel %vm296, %v303, %v305
    %v307 = vsel %vm295, %v285, %v288
    %v308 = vsel %vm298, %v294, 1326507024
    %v309 = vsel %vm297, %v291, %v308
    %v310 = vsel %vm296, %v307, %v309
    %v311 = vshll.u32 %v271, 8
    %v312 = vmul.u32.u64.compose %v311, %v310
    %v313 = vextract.low.u32 %v312
    %v314 = vextract.high.u32 %v312
    %v315 = vmul.u32.u64.compose %v311, %v306
    %v316 = vextract.low.u32 %v315
    %v317 = vextract.high.u32 %v315
    %v318 = vmul.u32 %v311, %v302
    %v319 = vadd.s32 %v314, %v316
    %vm320 = vc.u32 %v314, %v316
    %v321 = vadd.s32 %v317, 1
    %v322 = vsel %vm320, %v321, %v317
    %v323 = vadd.s32 %v318, %v322
    %v324 = vadd.s32 %v323, 536870912
    %v325 = vshrl.u32 %v324, 30
    %v326 = vshll.u32 %v325, 30
    %v327 = vsub.s32 %v323, %v326
    %vm328 = vcmp.lt.s32.totalorder %v327, 0
    %v329 = vsub.s32 0, %v327
    %v330 = vsel %vm328, %v329, %v327
    %v331 = vclz %v330
    %v332 = vsub.s32 %v331, 2
    %vm333 = vcmp.gt.s32.totalorder 0, %v332
    %v334 = vsel %vm333, 0, %v332
    %v335 = vsub.s32 32, %v334
    %v336 = vshll.u32 %v327, %v334
    %v337 = vshrl.u32 %v319, %v335
    %v338 = vor.u32 %v336, %v337
    %v339 = vsub.s32 4294967266, %v334
    %v340 = vadd.s32 %v339, 127
    %v341 = vshll.u32 %v340, 23
    %v342 = vor.u32 4788187, %v341
    %v343 = vand.u32 2147483647, %v342
    %v345 = vcvt.s32.f32 %v338
    %v346 = vmul.f32 %v345, %v343
    %v347 = vxor.u32 %v346, 2147483648
    %v348 = vsel %vm265, %v347, %v346
    %v349 = vsub.s32 4, %v325
    %v350 = vsel %vm265, %v349, %v325
    %v351 = vsel %vm264, %v159, %v348
    %v352 = vsel %vm264, 0, %v350
    %v353 = vcosq.f32.pop %v351
    %v354 = vsinq.f32.pop %v351
    %vm355 = vweird.f32 %v159
    %v356 = vand.u32 %v352, 3
    %vm357 = vcmp.lt.s32.totalorder %v356, 2
    %vm358 = vcmp.eq.s32.totalorder %v356, 0
    %v359 = vxor.u32 %v354, 2147483648
    %v360 = vsel %vm358, %v353, %v359
    %vm361 = vcmp.eq.s32.totalorder %v356, 2
    %v362 = vxor.u32 %v353, 2147483648
    %v363 = vsel %vm361, %v362, %v354
    %v364 = vsel %vm357, %v360, %v363
    %v365 = vsel %vm355, nan, %v364
    %v366 = vpack.c.bf16 %v365, %v262
    %v367 = vld [vmem:[#allocation2] sm:$0xf]
    %v368 = vld [vmem:[#allocation2 + $0x4] sm:$0xf]
    %v369 = vld [vmem:[#allocation2 + $0x8] sm:$0xf]
    %v370 = vld [vmem:[#allocation2 + $0xc] sm:$0xf]
    %v371 = vld [vmem:[#allocation2 + $0x10] sm:$0xf]
    %v372 = vld [vmem:[#allocation2 + $0x14] sm:$0xf]
    %v373 = vld [vmem:[#allocation2 + $0x18] sm:$0xf]
    %v374 = vld [vmem:[#allocation2 + $0x1c] sm:$0xf]
    %v375 = vld [vmem:[#allocation2 + $0x20] sm:$0xf]
    %v376 = vld [vmem:[#allocation2 + $0x24] sm:$0xf]
    %v377 = vld [vmem:[#allocation2 + $0x28] sm:$0xf]
    %v378 = vld [vmem:[#allocation2 + $0x2c] sm:$0xf]
    %v379 = vld [vmem:[#allocation2 + $0x30] sm:$0xf]
    %v380 = vld [vmem:[#allocation2 + $0x34] sm:$0xf]
    %v381 = vld [vmem:[#allocation2 + $0x38] sm:$0xf]
    %v382 = vld [vmem:[#allocation2 + $0x3c] sm:$0xf]
    %v383 = vld [vmem:[%s6] sm:$0x1]
    %v385 = vlaneseq
    %v386 = vshrl.u32 %v385, 7
    %v387 = vsub.s32 0, %v386
    %v388 = vrot.slane %v383, %v387
    %v406 = vunpack.c.l.b16 %v367
    %v407 = vunpack.c.l.b16 %v368
    %v408 = vunpack.c.l.b16 %v369
    %v409 = vunpack.c.l.b16 %v370
    %v410 = vunpack.c.l.b16 %v371
    %v411 = vunpack.c.l.b16 %v372
    %v412 = vunpack.c.l.b16 %v373
    %v413 = vunpack.c.l.b16 %v374
    %v414 = vunpack.c.l.b16 %v375
    %v415 = vunpack.c.l.b16 %v376
    %v416 = vunpack.c.l.b16 %v377
    %v417 = vunpack.c.l.b16 %v378
    %v418 = vunpack.c.l.b16 %v379
    %v419 = vunpack.c.l.b16 %v380
    %v420 = vunpack.c.l.b16 %v381
    %v421 = vunpack.c.l.b16 %v382
    %v422 = vpack.c.b16 %v407, %v406
    %v423 = vpack.c.b16 %v409, %v408
    %v424 = vpack.c.b16 %v411, %v410
    %v425 = vpack.c.b16 %v413, %v412
    %v426 = vpack.c.b16 %v415, %v414
    %v427 = vpack.c.b16 %v417, %v416
    %v428 = vpack.c.b16 %v419, %v418
    %v429 = vpack.c.b16 %v421, %v420
    %438 = vmatprep.subr.bf16.mxu0 0
    %439 = vmatpush1.bf16.msra.mxu0 %v422
    %440 = vmatprep.subr.bf16.mxu0 0
    %441 = vmatpush1.bf16.msra.mxu0 %v423
    %442 = vmatprep.subr.bf16.mxu0 0
    %443 = vmatpush1.bf16.msra.mxu0 %v424
    %444 = vmatprep.subr.bf16.mxu0 0
    %445 = vmatpush1.bf16.msra.mxu0 %v425
    %446 = vmatprep.subr.bf16.mxu0 0
    %447 = vmatpush1.bf16.msra.mxu0 %v426
    %448 = vmatprep.subr.bf16.mxu0 0
    %449 = vmatpush1.bf16.msra.mxu0 %v427
    %450 = vmatprep.subr.bf16.mxu0 0
    %451 = vmatpush1.bf16.msra.mxu0 %v428
    %452 = vmatprep.subr.bf16.mxu0 0
    %453 = vmatpush1.bf16.msra.mxu0 %v429
    %454 = vmatprep.subr.bf16.mxu0 0
    %455 = vmatpush1.bf16.msra.mxu0 0
    %456 = vmatprep.subr.bf16.mxu0 0
    %457 = vmatpush1.bf16.msra.mxu0 0
    %458 = vmatprep.subr.bf16.mxu0 0
    %459 = vmatpush1.bf16.msra.mxu0 0
    %460 = vmatprep.subr.bf16.mxu0 0
    %461 = vmatpush1.bf16.msra.mxu0 0
    %462 = vmatprep.subr.bf16.mxu0 0
    %463 = vmatpush1.bf16.msra.mxu0 0
    %464 = vmatprep.subr.bf16.mxu0 0
    %465 = vmatpush1.bf16.msra.mxu0 0
    %466 = vmatprep.subr.bf16.mxu0 0
    %467 = vmatpush1.bf16.msra.mxu0 0
    %468 = vmatprep.subr.bf16.mxu0 0
    %469 = vmatpush1.bf16.msra.mxu0 0
    %470 = vmatprep.mubr.bf16.mxu0 0
    %471 = vmatmul.mubr.bf16.gmra.mrb[0].mxu0 %v366
    %v472 = vpop.f32.mrb[0].mxu0
    %v473 = vadd.f32 %v388, %v472
    %v474 = vpop.f32.mrb[0].mxu0
    %v475 = vpop.f32.mrb[0].mxu0
    %v476 = vadd.f32 %v388, %v475
    %v477 = vpop.f32.mrb[0].mxu0
    %478 = vdwg.mxu0
    %v479 = vmax.f32 %v473, 0.0
    %v480 = vmax.f32 %v476, 0.0
    %v483 = vunpack.c.l.s4 1966171168
    %v484 = vunpack.c.0.s8 %v483
    %v485 = vlaneseq
    %v486 = vshrl.u32 %v485, 7
    %v487 = vsub.s32 %v484, %v486
    %v488 = vrot.slane %v138, %v487
    %v489 = vcombine.high %v488, %v488
    %v491 = vunpack.c.l.s4 1966171168
    %v492 = vunpack.c.0.s8 %v491
    %v493 = vlaneseq
    %v494 = vshrl.u32 %v493, 7
    %v495 = vsub.s32 %v492, %v494
    %v496 = vrot.slane %v488, %v495
    %v498 = vunpack.c.l.s4 1966171168
    %v499 = vunpack.c.0.s8 %v498
    %v500 = vlaneseq
    %v501 = vshrl.u32 %v500, 7
    %v502 = vsub.s32 %v499, %v501
    %v503 = vrot.slane %v489, %v502
    %v504 = vlaneseq
    %v505 = vshrl.u32 %v504, 7
    %v506 = vsub.s32 0, %v505
    %v507 = vrot.slane %v496, %v506
    %v508 = vlaneseq
    %v509 = vshrl.u32 %v508, 7
    %v510 = vsub.s32 0, %v509
    %v511 = vrot.slane %v503, %v510
    %v514 = vmul.f32 %v507, %v479
    %v515 = vmul.f32 %v511, %v480
    %v516 = vpack.c.bf16 %v515, %v514
    %v517 = vld [vmem:[#allocation4] sm:$0xf]
    %v518 = vld [vmem:[#allocation4 + $0x4] sm:$0xf]
    %v519 = vld [vmem:[#allocation4 + $0x8] sm:$0xf]
    %v520 = vld [vmem:[#allocation4 + $0xc] sm:$0xf]
    %v521 = vld [vmem:[#allocation4 + $0x10] sm:$0xf]
    %v522 = vld [vmem:[#allocation4 + $0x14] sm:$0xf]
    %v523 = vld [vmem:[#allocation4 + $0x18] sm:$0xf]
    %v524 = vld [vmem:[#allocation4 + $0x1c] sm:$0xf]
    %v525 = vld [vmem:[#allocation4 + $0x20] sm:$0xf]
    %v526 = vld [vmem:[#allocation4 + $0x24] sm:$0xf]
    %v527 = vld [vmem:[#allocation4 + $0x28] sm:$0xf]
    %v528 = vld [vmem:[#allocation4 + $0x2c] sm:$0xf]
    %v529 = vld [vmem:[#allocation4 + $0x30] sm:$0xf]
    %v530 = vld [vmem:[#allocation4 + $0x34] sm:$0xf]
    %v531 = vld [vmem:[#allocation4 + $0x38] sm:$0xf]
    %v532 = vld [vmem:[#allocation4 + $0x3c] sm:$0xf]
    %v533 = vld [vmem:[%s8] sm:$0x1]
    %v535 = vlaneseq
    %v536 = vshrl.u32 %v535, 7
    %v537 = vsub.s32 0, %v536
    %v538 = vrot.slane %v533, %v537
    %v556 = vunpack.c.l.b16 %v517
    %v557 = vunpack.c.l.b16 %v518
    %v558 = vunpack.c.l.b16 %v519
    %v559 = vunpack.c.l.b16 %v520
    %v560 = vunpack.c.l.b16 %v521
    %v561 = vunpack.c.l.b16 %v522
    %v562 = vunpack.c.l.b16 %v523
    %v563 = vunpack.c.l.b16 %v524
    %v564 = vunpack.c.l.b16 %v525
    %v565 = vunpack.c.l.b16 %v526
    %v566 = vunpack.c.l.b16 %v527
    %v567 = vunpack.c.l.b16 %v528
    %v568 = vunpack.c.l.b16 %v529
    %v569 = vunpack.c.l.b16 %v530
    %v570 = vunpack.c.l.b16 %v531
    %v571 = vunpack.c.l.b16 %v532
    %v572 = vpack.c.b16 %v557, %v556
    %v573 = vpack.c.b16 %v559, %v558
    %v574 = vpack.c.b16 %v561, %v560
    %v575 = vpack.c.b16 %v563, %v562
    %v576 = vpack.c.b16 %v565, %v564
    %v577 = vpack.c.b16 %v567, %v566
    %v578 = vpack.c.b16 %v569, %v568
    %v579 = vpack.c.b16 %v571, %v570
    %588 = vmatprep.subr.bf16.mxu0 0
    %589 = vmatpush1.bf16.msra.mxu0 %v572
    %590 = vmatprep.subr.bf16.mxu0 0
    %591 = vmatpush1.bf16.msra.mxu0 %v573
    %592 = vmatprep.subr.bf16.mxu0 0
    %593 = vmatpush1.bf16.msra.mxu0 %v574
    %594 = vmatprep.subr.bf16.mxu0 0
    %595 = vmatpush1.bf16.msra.mxu0 %v575
    %596 = vmatprep.subr.bf16.mxu0 0
    %597 = vmatpush1.bf16.msra.mxu0 %v576
    %598 = vmatprep.subr.bf16.mxu0 0
    %599 = vmatpush1.bf16.msra.mxu0 %v577
    %600 = vmatprep.subr.bf16.mxu0 0
    %601 = vmatpush1.bf16.msra.mxu0 %v578
    %602 = vmatprep.subr.bf16.mxu0 0
    %603 = vmatpush1.bf16.msra.mxu0 %v579
    %604 = vmatprep.subr.bf16.mxu0 0
    %605 = vmatpush1.bf16.msra.mxu0 0
    %606 = vmatprep.subr.bf16.mxu0 0
    %607 = vmatpush1.bf16.msra.mxu0 0
    %608 = vmatprep.subr.bf16.mxu0 0
    %609 = vmatpush1.bf16.msra.mxu0 0
    %610 = vmatprep.subr.bf16.mxu0 0
    %611 = vmatpush1.bf16.msra.mxu0 0
    %612 = vmatprep.subr.bf16.mxu0 0
    %613 = vmatpush1.bf16.msra.mxu0 0
    %614 = vmatprep.subr.bf16.mxu0 0
    %615 = vmatpush1.bf16.msra.mxu0 0
    %616 = vmatprep.subr.bf16.mxu0 0
    %617 = vmatpush1.bf16.msra.mxu0 0
    %618 = vmatprep.subr.bf16.mxu0 0
    %619 = vmatpush1.bf16.msra.mxu0 0
    %620 = vmatprep.mubr.bf16.mxu0 0
    %621 = vmatmul.mubr.bf16.gmra.mrb[0].mxu0 %v516
    %v622 = vpop.f32.mrb[0].mxu0
    %v623 = vadd.f32 %v538, %v622
    %v624 = vpop.f32.mrb[0].mxu0
    %v625 = vpop.f32.mrb[0].mxu0
    %v626 = vadd.f32 %v538, %v625
    %v627 = vpop.f32.mrb[0].mxu0
    %628 = vdwg.mxu0
    %v629 = vmax.f32 %v623, 0.0
    %v630 = vmax.f32 %v626, 0.0
    %v631 = vpack.c.bf16 %v630, %v629
    %v632 = vld [vmem:[#allocation6] sm:$0xf]
    %v633 = vld [vmem:[#allocation6 + $0x4] sm:$0xf]
    %v634 = vld [vmem:[#allocation6 + $0x8] sm:$0xf]
    %v635 = vld [vmem:[#allocation6 + $0xc] sm:$0xf]
    %v636 = vld [vmem:[#allocation6 + $0x10] sm:$0xf]
    %v637 = vld [vmem:[#allocation6 + $0x14] sm:$0xf]
    %v638 = vld [vmem:[#allocation6 + $0x18] sm:$0xf]
    %v639 = vld [vmem:[#allocation6 + $0x1c] sm:$0xf]
    %v640 = vld [vmem:[#allocation6 + $0x20] sm:$0xf]
    %v641 = vld [vmem:[#allocation6 + $0x24] sm:$0xf]
    %v642 = vld [vmem:[#allocation6 + $0x28] sm:$0xf]
    %v643 = vld [vmem:[#allocation6 + $0x2c] sm:$0xf]
    %v644 = vld [vmem:[#allocation6 + $0x30] sm:$0xf]
    %v645 = vld [vmem:[#allocation6 + $0x34] sm:$0xf]
    %v646 = vld [vmem:[#allocation6 + $0x38] sm:$0xf]
    %v647 = vld [vmem:[#allocation6 + $0x3c] sm:$0xf]
    %v648 = vld [vmem:[%s10] sm:$0x1]
    %v650 = vlaneseq
    %v651 = vshrl.u32 %v650, 7
    %v652 = vsub.s32 0, %v651
    %v653 = vrot.slane %v648, %v652
    %v671 = vunpack.c.l.b16 %v632
    %v672 = vunpack.c.l.b16 %v633
    %v673 = vunpack.c.l.b16 %v634
    %v674 = vunpack.c.l.b16 %v635
    %v675 = vunpack.c.l.b16 %v636
    %v676 = vunpack.c.l.b16 %v637
    %v677 = vunpack.c.l.b16 %v638
    %v678 = vunpack.c.l.b16 %v639
    %v679 = vunpack.c.l.b16 %v640
    %v680 = vunpack.c.l.b16 %v641
    %v681 = vunpack.c.l.b16 %v642
    %v682 = vunpack.c.l.b16 %v643
    %v683 = vunpack.c.l.b16 %v644
    %v684 = vunpack.c.l.b16 %v645
    %v685 = vunpack.c.l.b16 %v646
    %v686 = vunpack.c.l.b16 %v647
    %v687 = vpack.c.b16 %v672, %v671
    %v688 = vpack.c.b16 %v674, %v673
    %v689 = vpack.c.b16 %v676, %v675
    %v690 = vpack.c.b16 %v678, %v677
    %v691 = vpack.c.b16 %v680, %v679
    %v692 = vpack.c.b16 %v682, %v681
    %v693 = vpack.c.b16 %v684, %v683
    %v694 = vpack.c.b16 %v686, %v685
    %703 = vmatprep.subr.bf16.mxu0 0
    %704 = vmatpush1.bf16.msra.mxu0 %v687
    %705 = vmatprep.subr.bf16.mxu0 0
    %706 = vmatpush1.bf16.msra.mxu0 %v688
    %707 = vmatprep.subr.bf16.mxu0 0
    %708 = vmatpush1.bf16.msra.mxu0 %v689
    %709 = vmatprep.subr.bf16.mxu0 0
    %710 = vmatpush1.bf16.msra.mxu0 %v690
    %711 = vmatprep.subr.bf16.mxu0 0
    %712 = vmatpush1.bf16.msra.mxu0 %v691
    %713 = vmatprep.subr.bf16.mxu0 0
    %714 = vmatpush1.bf16.msra.mxu0 %v692
    %715 = vmatprep.subr.bf16.mxu0 0
    %716 = vmatpush1.bf16.msra.mxu0 %v693
    %717 = vmatprep.subr.bf16.mxu0 0
    %718 = vmatpush1.bf16.msra.mxu0 %v694
    %719 = vmatprep.subr.bf16.mxu0 0
    %720 = vmatpush1.bf16.msra.mxu0 0
    %721 = vmatprep.subr.bf16.mxu0 0
    %722 = vmatpush1.bf16.msra.mxu0 0
    %723 = vmatprep.subr.bf16.mxu0 0
    %724 = vmatpush1.bf16.msra.mxu0 0
    %725 = vmatprep.subr.bf16.mxu0 0
    %726 = vmatpush1.bf16.msra.mxu0 0
    %727 = vmatprep.subr.bf16.mxu0 0
    %728 = vmatpush1.bf16.msra.mxu0 0
    %729 = vmatprep.subr.bf16.mxu0 0
    %730 = vmatpush1.bf16.msra.mxu0 0
    %731 = vmatprep.subr.bf16.mxu0 0
    %732 = vmatpush1.bf16.msra.mxu0 0
    %733 = vmatprep.subr.bf16.mxu0 0
    %734 = vmatpush1.bf16.msra.mxu0 0
    %735 = vmatprep.mubr.bf16.mxu0 0
    %736 = vmatmul.mubr.bf16.gmra.mrb[0].mxu0 %v631
    %v737 = vpop.f32.mrb[0].mxu0
    %v738 = vadd.f32 %v653, %v737
    %v739 = vpop.f32.mrb[0].mxu0
    %v740 = vpop.f32.mrb[0].mxu0
    %v741 = vadd.f32 %v653, %v740
    %v742 = vpop.f32.mrb[0].mxu0
    %743 = vdwg.mxu0
    %vm744 = vcmask 31744
    %745 = vst.msk [vmem:[%s11] sm:$0xff] %vm744, %v738
    %746 = vst.msk [vmem:[%s11 + $0x8] sm:$0xff] %vm744, %v741
    // Predicated region
    $region58: #{tpu_custom_call.1} parent=1 // pred_check
      _
    $region59: #{tpu_custom_call.1} parent=1 // pred_check_branch
      %748 = sbr.rel (0) target = $region61
    $region60: #{tpu_custom_call.1} parent=1 // pred_region
      _
    $region61: #{tpu_custom_call.1} parent=1 // pred_fallthru
      _
    // Predicated region
    $region62: #{tpu_custom_call.1} parent=1 // pred_check
      _
    $region63: #{tpu_custom_call.1} parent=1 // pred_check_branch
      %750 = sbr.rel (0) target = $region65
    $region64: #{tpu_custom_call.1} parent=1 // pred_region
      _
    $region65: #{tpu_custom_call.1} parent=1 // pred_fallthru
      _
    %751 = vsyncpa [#allocation3], 1
    %752 = vsyncpa [#allocation5], 1

</llo_original>
